<compile_context>
chip_gen: v6e
topology: v6e:2x2x1
jax: 0.10.0
libtpu: 0.0.40
codegen_flags: <defaults>
</compile_context>

<pallas_src>
import functools

import jax
import jax.numpy as jnp
from jax.experimental import pallas as pl
from jax.experimental.pallas import tpu as pltpu

# ----------------------- model config (small, synthetic) ---------------------
BATCH = 2
SEQ = 8
HIDDEN = 32
NUM_HEADS = 2
HEAD_DIM = HIDDEN // NUM_HEADS
INTERMEDIATE = 64
NUM_LAYERS = 2
VOCAB = 100
PAD_ID = 1                       # RoBERTa padding_idx
MAX_POS = SEQ + PAD_ID + 7       # position table large enough for pad-offset ids
LN_EPS = 1e-5                    # RoBERTa layer_norm_eps
MATMUL_DTYPE = jnp.bfloat16      # MXU operand dtype (accumulation stays f32)


def _layernorm_f32(x, gamma, beta, eps):
    """LayerNorm over the last axis; all statistics in f32."""
    mu = jnp.mean(x, axis=-1, keepdims=True)
    var = jnp.mean(jnp.square(x - mu), axis=-1, keepdims=True)
    return (x - mu) * jax.lax.rsqrt(var + eps) * gamma + beta


# --------------------- the single fused forward kernel -----------------------
def _fused_roberta_kernel(
        emb_ref, mask_ref, eg_ref, eb_ref,
        wqkv_ref, bqkv_ref, wo_ref, bo_ref, ln1g_ref, ln1b_ref,
        w1_ref, b1_ref, w2_ref, b2_ref, ln2g_ref, ln2b_ref,
        wp_ref, bp_ref, wc_ref, bc_ref,
        pooled_ref, logits_ref,
        resid_ref,
        *, eps, scale, seq, nheads, hdim):
    """One grid step = (batch block b [parallel], encoder layer l [arbitrary])."""
    l = pl.program_id(1)
    h = nheads * hdim

    # ---- prologue (l == 0): embedding-sum LayerNorm seeds the residual ------
    @pl.when(l == 0)
    def _():
        x0 = emb_ref[0].astype(jnp.float32)                          # (S, H)
        resid_ref[...] = _layernorm_f32(x0, eg_ref[...], eb_ref[...], eps)

    x = resid_ref[...]                                               # (S, H) f32

    # ---- self-attention: fused lane-dense (H, 3H) QKV projection ------------
    qkv = jnp.dot(x.astype(MATMUL_DTYPE), wqkv_ref[0],
                  preferred_element_type=jnp.float32) + bqkv_ref[0]  # (S, 3H)
    # Single head-major relayout; batched einsums replace per-head slice/concat.
    qkv = jnp.swapaxes(qkv.reshape(seq, 3 * nheads, hdim), 0, 1)     # (3nh, S, d)
    q = qkv[0:nheads]
    k = qkv[nheads:2 * nheads]
    v = qkv[2 * nheads:3 * nheads]

    mask = mask_ref[0]                                               # (1, S) additive f32
    s_scores = jnp.einsum('hqd,hkd->hqk',
                          q.astype(MATMUL_DTYPE), k.astype(MATMUL_DTYPE),
                          preferred_element_type=jnp.float32) * scale + mask
    s_scores = s_scores - jnp.max(s_scores, axis=-1, keepdims=True)
    p_attn = jnp.exp(s_scores)
    p_attn = p_attn * pl.reciprocal(jnp.sum(p_attn, axis=-1, keepdims=True),
                                    approx=True)
    ctx = jnp.einsum('hqk,hkd->hqd',
                     p_attn.astype(MATMUL_DTYPE), v.astype(MATMUL_DTYPE),
                     preferred_element_type=jnp.float32)             # (nh, S, d)
    ctx = jnp.swapaxes(ctx, 0, 1).reshape(seq, h)                    # (S, H)

    attn_out = jnp.dot(ctx.astype(MATMUL_DTYPE), wo_ref[0],
                       preferred_element_type=jnp.float32) + bo_ref[0]

    # Residual add folded into LayerNorm 1 (f32).
    x1 = _layernorm_f32(x + attn_out, ln1g_ref[0], ln1b_ref[0], eps)

    # FFN: GELU(x1 @ w1 + b1) @ w2 + b2.
    ff = jnp.dot(x1.astype(MATMUL_DTYPE), w1_ref[0],
                 preferred_element_type=jnp.float32) + b1_ref[0]
    ff = 0.5 * ff * (1.0 + jax.lax.erf(ff * jnp.float32(0.7071067811865476)))
    ff = jnp.dot(ff.astype(MATMUL_DTYPE), w2_ref[0],
                 preferred_element_type=jnp.float32) + b2_ref[0]

    # Residual add folded into LayerNorm 2 (f32); residual stays resident in VMEM.
    x2 = _layernorm_f32(x1 + ff, ln2g_ref[0], ln2b_ref[0], eps)
    resid_ref[...] = x2

    # ---- epilogue (l == L-1): pooler(tanh on <s>) + dropout(p=0) + classifier
    @pl.when(l == pl.num_programs(1) - 1)
    def _():
        cls = x2[0:1, :]                                             # (1, H) CLS token
        pooled = jnp.tanh(jnp.dot(cls.astype(MATMUL_DTYPE), wp_ref[...],
                                  preferred_element_type=jnp.float32) + bp_ref[...])
        # nn.Dropout(p=0) is the identity.
        # classifier Linear(H, 1) as a VPU multiply-reduce (N=1 is MXU-hostile).
        logits = jnp.sum(pooled * wc_ref[...], axis=-1, keepdims=True) + bc_ref[...]
        pooled_ref[...] = pooled.reshape(pooled_ref.shape).astype(pooled_ref.dtype)
        logits_ref[...] = logits.reshape(logits_ref.shape).astype(logits_ref.dtype)


def _fused_forward(emb_sum, mask_add, p):
    b, s, h = emb_sum.shape
    nl = p["wqkv"].shape[0]
    inter = INTERMEDIATE

    def at_batch(bb, ll):     # per-batch tensors (resident across the layer axis)
        return (bb, 0, 0)

    def at_layer(bb, ll):     # stacked per-layer weights (auto double-buffered)
        return (ll, 0, 0)

    def fixed2(bb, ll):       # shared small 2-D params
        return (0, 0)

    in_specs = [
        pl.BlockSpec((1, s, h), at_batch),          # summed embeddings (B, S, H)
        pl.BlockSpec((1, 1, s), at_batch),          # additive attention mask (B, 1, S)
        pl.BlockSpec((1, h), fixed2),               # embedding LN gamma
        pl.BlockSpec((1, h), fixed2),               # embedding LN beta
        pl.BlockSpec((1, h, 3 * h), at_layer),      # wqkv
        pl.BlockSpec((1, 1, 3 * h), at_layer),      # bqkv
        pl.BlockSpec((1, h, h), at_layer),          # wo
        pl.BlockSpec((1, 1, h), at_layer),          # bo
        pl.BlockSpec((1, 1, h), at_layer),          # ln1 gamma
        pl.BlockSpec((1, 1, h), at_layer),          # ln1 beta
        pl.BlockSpec((1, h, inter), at_layer),      # w1
        pl.BlockSpec((1, 1, inter), at_layer),      # b1
        pl.BlockSpec((1, inter, h), at_layer),      # w2
        pl.BlockSpec((1, 1, h), at_layer),          # b2
        pl.BlockSpec((1, 1, h), at_layer),          # ln2 gamma
        pl.BlockSpec((1, 1, h), at_layer),          # ln2 beta
        pl.BlockSpec((h, h), fixed2),               # pooler weight
        pl.BlockSpec((1, h), fixed2),               # pooler bias
        pl.BlockSpec((1, h), fixed2),               # classifier weight
        pl.BlockSpec((1, 1), fixed2),               # classifier bias
    ]
    out_specs = (
        pl.BlockSpec((1, 1, h), at_batch),          # pooled (B, 1, H)
        pl.BlockSpec((1, 1, 1), at_batch),          # logits (B, 1, 1)
    )

    # Advisory cost estimate for XLA scheduling.
    flops_layer = (2 * s * h * 3 * h + 4 * NUM_HEADS * s * s * HEAD_DIM
                   + 2 * s * h * h + 4 * s * h * inter)
    flops = b * nl * flops_layer + b * (2 * h * h + 2 * h)
    transcend = b * nl * (NUM_HEADS * s * s + s * inter + 2 * s) + b * h
    per_layer_bytes = 2 * (3 * h * h + h * h + 2 * h * inter) + 4 * (9 * h + inter)
    bytes_accessed = (4 * b * s * h + 4 * b * s + b * nl * per_layer_bytes
                      + 2 * h * h + 4 * (3 * h + 1) + 4 * b * (h + 1))

    pooled3, logits3 = pl.pallas_call(
        functools.partial(_fused_roberta_kernel, eps=LN_EPS,
                          scale=1.0 / (HEAD_DIM ** 0.5),
                          seq=s, nheads=NUM_HEADS, hdim=HEAD_DIM),
        grid=(b, nl),
        out_shape=(jax.ShapeDtypeStruct((b, 1, h), jnp.float32),
                   jax.ShapeDtypeStruct((b, 1, 1), jnp.float32)),
        in_specs=in_specs,
        out_specs=out_specs,
        scratch_shapes=[pltpu.VMEM((s, h), jnp.float32)],   # resident residual stream
        compiler_params=pltpu.CompilerParams(
            dimension_semantics=("parallel", "arbitrary")),
        cost_estimate=pl.CostEstimate(flops=int(flops),
                                      transcendentals=int(transcend),
                                      bytes_accessed=int(bytes_accessed)),
    )(emb_sum, mask_add, p["emb_ln_g"], p["emb_ln_b"],
      p["wqkv"], p["bqkv"], p["wo"], p["bo"], p["ln1_g"], p["ln1_b"],
      p["w1"], p["b1"], p["w2"], p["b2"], p["ln2_g"], p["ln2_b"],
      p["w_pool"], p["b_pool"], p["w_cls"], p["b_cls"])
    return pooled3.reshape(b, h), logits3.reshape(b, 1)


# --------------------------- parameter construction --------------------------
def init_params(key):
    keys = iter(jax.random.split(key, 16))

    def nrm(shape, dtype=jnp.float32):
        return (0.02 * jax.random.normal(next(keys), shape, jnp.float32)).astype(dtype)

    def ones(shape):
        return jnp.ones(shape, jnp.float32)

    def zeros(shape):
        return jnp.zeros(shape, jnp.float32)

    nl = NUM_LAYERS
    return dict(
        word_emb=nrm((VOCAB, HIDDEN)),
        pos_emb=nrm((MAX_POS, HIDDEN)),
        type_emb=nrm((1, HIDDEN)),                     # RoBERTa type_vocab_size == 1
        emb_ln_g=ones((1, HIDDEN)), emb_ln_b=zeros((1, HIDDEN)),
        # Stacked per-layer weights: leading axis = layer, selected by the grid.
        wqkv=nrm((nl, HIDDEN, 3 * HIDDEN), MATMUL_DTYPE),     # [Wq | Wk | Wv]
        bqkv=zeros((nl, 1, 3 * HIDDEN)),
        wo=nrm((nl, HIDDEN, HIDDEN), MATMUL_DTYPE),
        bo=zeros((nl, 1, HIDDEN)),
        ln1_g=ones((nl, 1, HIDDEN)), ln1_b=zeros((nl, 1, HIDDEN)),
        w1=nrm((nl, HIDDEN, INTERMEDIATE), MATMUL_DTYPE),
        b1=zeros((nl, 1, INTERMEDIATE)),
        w2=nrm((nl, INTERMEDIATE, HIDDEN), MATMUL_DTYPE),
        b2=zeros((nl, 1, HIDDEN)),
        ln2_g=ones((nl, 1, HIDDEN)), ln2_b=zeros((nl, 1, HIDDEN)),
        w_pool=nrm((HIDDEN, HIDDEN), MATMUL_DTYPE), b_pool=zeros((1, HIDDEN)),
        w_cls=nrm((1, HIDDEN)), b_cls=zeros((1, 1)),          # classifier Linear(H, 1)
    )


# --------------------------------- forward -----------------------------------
def roberta_pooled_output(params, input_ids, attention_mask):
    b, s = input_ids.shape

    # TODO(synk): data-dependent embedding gathers + RoBERTa pad-offset
    # position-id cumsum stay in XLA (a manual DMA gather is not worth it here).
    not_pad = (input_ids != PAD_ID).astype(jnp.int32)
    position_ids = jnp.cumsum(not_pad, axis=1) * not_pad + PAD_ID
    word = jnp.take(params["word_emb"], input_ids, axis=0)          # (B, S, H)
    pos = jnp.take(params["pos_emb"], position_ids, axis=0)         # (B, S, H)
    emb_sum = word + pos + params["type_emb"]                       # token-type id 0

    # Additive attention mask, kept in f32.
    mask_add = ((1.0 - attention_mask.astype(jnp.float32)) * -1e9).reshape(b, 1, s)

    # Single fused pallas_call: embed-LN prologue, all encoder layers,
    # pooler + classifier epilogue.
    return _fused_forward(emb_sum, mask_add, params)


# ----------------------------------- main -------------------------------------
if __name__ == "__main__":
    key = jax.random.PRNGKey(0)
    k_param, k_ids = jax.random.split(key)

    params = init_params(k_param)
    input_ids = jax.random.randint(k_ids, (BATCH, SEQ), 2, VOCAB, dtype=jnp.int32)
    attention_mask = jnp.ones((BATCH, SEQ), dtype=jnp.int32)
    attention_mask = attention_mask.at[1, SEQ - 2:].set(0)          # some padding
    input_ids = jnp.where(attention_mask == 1, input_ids, PAD_ID)   # pad token id

    fwd = jax.jit(roberta_pooled_output)
    pooled, logits = fwd(params, input_ids, attention_mask)
    jax.block_until_ready((pooled, logits))

    assert pooled.shape == (BATCH, HIDDEN)
    assert logits.shape == (BATCH, 1)
    assert bool(jnp.all(jnp.isfinite(pooled))) and bool(jnp.all(jnp.isfinite(logits)))
    print("KERNEL_OK")
</pallas_src>

<mosaic_0001>
module attributes {stable_mosaic.version = 11 : i64} {
  func.func @_fused_roberta_kernel(%arg0: i32, %arg1: i32, %arg2: memref<1x8x32xf32, #tpu.memory_space<vmem>>, %arg3: memref<1x1x8xf32, #tpu.memory_space<vmem>>, %arg4: memref<1x32xf32, #tpu.memory_space<vmem>>, %arg5: memref<1x32xf32, #tpu.memory_space<vmem>>, %arg6: memref<1x32x96xbf16, #tpu.memory_space<vmem>>, %arg7: memref<1x1x96xf32, #tpu.memory_space<vmem>>, %arg8: memref<1x32x32xbf16, #tpu.memory_space<vmem>>, %arg9: memref<1x1x32xf32, #tpu.memory_space<vmem>>, %arg10: memref<1x1x32xf32, #tpu.memory_space<vmem>>, %arg11: memref<1x1x32xf32, #tpu.memory_space<vmem>>, %arg12: memref<1x32x64xbf16, #tpu.memory_space<vmem>>, %arg13: memref<1x1x64xf32, #tpu.memory_space<vmem>>, %arg14: memref<1x64x32xbf16, #tpu.memory_space<vmem>>, %arg15: memref<1x1x32xf32, #tpu.memory_space<vmem>>, %arg16: memref<1x1x32xf32, #tpu.memory_space<vmem>>, %arg17: memref<1x1x32xf32, #tpu.memory_space<vmem>>, %arg18: memref<32x32xbf16, #tpu.memory_space<vmem>>, %arg19: memref<1x32xf32, #tpu.memory_space<vmem>>, %arg20: memref<1x32xf32, #tpu.memory_space<vmem>>, %arg21: memref<1x1xf32, #tpu.memory_space<vmem>>, %arg22: memref<1x1x32xf32, #tpu.memory_space<vmem>>, %arg23: memref<1x1x1xf32, #tpu.memory_space<vmem>>, %arg24: memref<8x32xf32, #tpu.memory_space<vmem>>) attributes {dimension_semantics = [#tpu.dimension_semantics<parallel>, #tpu.dimension_semantics<arbitrary>], iteration_bounds = array<i64: 2, 2>, scalar_prefetch = 0 : i64, scratch_operands = 1 : i64, tpu.core_type = #tpu.core_type<tc>, window_params = [{transform_indices = @transform_0, window_bounds = array<i64: 1, 8, 32>}, {transform_indices = @transform_1, window_bounds = array<i64: 1, 1, 8>}, {pipeline_mode = #tpu.pipeline_mode<synchronous>, transform_indices = @transform_2, window_bounds = array<i64: 1, 32>}, {pipeline_mode = #tpu.pipeline_mode<synchronous>, transform_indices = @transform_3, window_bounds = array<i64: 1, 32>}, {transform_indices = @transform_4, window_bounds = array<i64: 1, 32, 96>}, {transform_indices = @transform_5, window_bounds = array<i64: 1, 1, 96>}, {transform_indices = @transform_6, window_bounds = array<i64: 1, 32, 32>}, {transform_indices = @transform_7, window_bounds = array<i64: 1, 1, 32>}, {transform_indices = @transform_8, window_bounds = array<i64: 1, 1, 32>}, {transform_indices = @transform_9, window_bounds = array<i64: 1, 1, 32>}, {transform_indices = @transform_10, window_bounds = array<i64: 1, 32, 64>}, {transform_indices = @transform_11, window_bounds = array<i64: 1, 1, 64>}, {transform_indices = @transform_12, window_bounds = array<i64: 1, 64, 32>}, {transform_indices = @transform_13, window_bounds = array<i64: 1, 1, 32>}, {transform_indices = @transform_14, window_bounds = array<i64: 1, 1, 32>}, {transform_indices = @transform_15, window_bounds = array<i64: 1, 1, 32>}, {pipeline_mode = #tpu.pipeline_mode<synchronous>, transform_indices = @transform_16, window_bounds = array<i64: 32, 32>}, {pipeline_mode = #tpu.pipeline_mode<synchronous>, transform_indices = @transform_17, window_bounds = array<i64: 1, 32>}, {pipeline_mode = #tpu.pipeline_mode<synchronous>, transform_indices = @transform_18, window_bounds = array<i64: 1, 32>}, {pipeline_mode = #tpu.pipeline_mode<synchronous>, transform_indices = @transform_19, window_bounds = array<i64: 1, 1>}, {transform_indices = @transform_20, window_bounds = array<i64: 1, 1, 32>}, {transform_indices = @transform_21, window_bounds = array<i64: 1, 1, 1>}]} {
    %c0_i32 = arith.constant 0 : i32
    %0 = arith.cmpi eq, %arg1, %c0_i32 : i32
    %1 = arith.extui %0 : i1 to i32
    %c0_i32_0 = arith.constant 0 : i32
    %2 = arith.cmpi ne, %1, %c0_i32_0 : i32
    scf.if %2 {
      %c0_65 = arith.constant 0 : index
      %c0_66 = arith.constant 0 : index
      %c0_67 = arith.constant 0 : index
      %132 = vector.load %arg2[%c0_65, %c0_66, %c0_67] : memref<1x8x32xf32, #tpu.memory_space<vmem>>, vector<1x8x32xf32>
      %133 = vector.shape_cast %132 : vector<1x8x32xf32> to vector<8x32xf32>
      %c0_68 = arith.constant 0 : index
      %c0_69 = arith.constant 0 : index
      %134 = vector.load %arg4[%c0_68, %c0_69] : memref<1x32xf32, #tpu.memory_space<vmem>>, vector<1x32xf32>
      %c0_70 = arith.constant 0 : index
      %c0_71 = arith.constant 0 : index
      %135 = vector.load %arg5[%c0_70, %c0_71] : memref<1x32xf32, #tpu.memory_space<vmem>>, vector<1x32xf32>
      %cst_72 = arith.constant dense<0.000000e+00> : vector<8xf32>
      %136 = vector.multi_reduction <add>, %133, %cst_72 [1] : vector<8x32xf32> to vector<8xf32>
      %137 = vector.shape_cast %136 : vector<8xf32> to vector<8x1xf32>
      %cst_73 = arith.constant 3.200000e+01 : f32
      %138 = vector.broadcast %cst_73 : f32 to vector<8x1xf32>
      %139 = arith.divf %137, %138 : vector<8x1xf32>
      %140 = vector.broadcast %139 : vector<8x1xf32> to vector<8x32xf32>
      %141 = arith.subf %133, %140 : vector<8x32xf32>
      %142 = arith.mulf %141, %141 : vector<8x32xf32>
      %cst_74 = arith.constant dense<0.000000e+00> : vector<8xf32>
      %143 = vector.multi_reduction <add>, %142, %cst_74 [1] : vector<8x32xf32> to vector<8xf32>
      %144 = vector.shape_cast %143 : vector<8xf32> to vector<8x1xf32>
      %cst_75 = arith.constant 3.200000e+01 : f32
      %145 = vector.broadcast %cst_75 : f32 to vector<8x1xf32>
      %146 = arith.divf %144, %145 : vector<8x1xf32>
      %147 = vector.broadcast %139 : vector<8x1xf32> to vector<8x32xf32>
      %148 = arith.subf %133, %147 : vector<8x32xf32>
      %cst_76 = arith.constant 9.99999974E-6 : f32
      %149 = vector.broadcast %cst_76 : f32 to vector<8x1xf32>
      %150 = arith.addf %146, %149 : vector<8x1xf32>
      %151 = math.rsqrt %150 : vector<8x1xf32>
      %152 = vector.broadcast %151 : vector<8x1xf32> to vector<8x32xf32>
      %153 = arith.mulf %148, %152 : vector<8x32xf32>
      %154 = vector.broadcast %134 : vector<1x32xf32> to vector<8x32xf32>
      %155 = arith.mulf %153, %154 : vector<8x32xf32>
      %156 = vector.broadcast %135 : vector<1x32xf32> to vector<8x32xf32>
      %157 = arith.addf %155, %156 : vector<8x32xf32>
      %c0_77 = arith.constant 0 : index
      %c0_78 = arith.constant 0 : index
      %158 = vector.load %arg24[%c0_77, %c0_78] : memref<8x32xf32, #tpu.memory_space<vmem>>, vector<8x32xf32>
      tpu.vector_store %arg24[%c0_77, %c0_78], %157 {strides = array<i32>} : memref<8x32xf32, #tpu.memory_space<vmem>>, vector<8x32xf32>,
    } else {
    }
    %c0 = arith.constant 0 : index
    %c0_1 = arith.constant 0 : index
    %3 = vector.load %arg24[%c0, %c0_1] : memref<8x32xf32, #tpu.memory_space<vmem>>, vector<8x32xf32>
    %4 = arith.truncf %3 : vector<8x32xf32> to vector<8x32xbf16>
    %c0_2 = arith.constant 0 : index
    %c0_3 = arith.constant 0 : index
    %c0_4 = arith.constant 0 : index
    %5 = vector.load %arg6[%c0_2, %c0_3, %c0_4] : memref<1x32x96xbf16, #tpu.memory_space<vmem>>, vector<1x32x96xbf16>
    %6 = vector.shape_cast %5 : vector<1x32x96xbf16> to vector<32x96xbf16>
    %cst = arith.constant dense<0.000000e+00> : vector<8x96xf32>
    %7 = tpu.matmul %4, %6, %cst {dimension_numbers = #tpu.dot_dimension_numbers<[1], [0], [0], [1], [0, 0, 1, 1], [], []>} : vector<8x32xbf16>, vector<32x96xbf16>, vector<8x96xf32> -> vector<8x96xf32>
    %c0_5 = arith.constant 0 : index
    %c0_6 = arith.constant 0 : index
    %c0_7 = arith.constant 0 : index
    %8 = vector.load %arg7[%c0_5, %c0_6, %c0_7] : memref<1x1x96xf32, #tpu.memory_space<vmem>>, vector<1x1x96xf32>
    %9 = vector.shape_cast %8 : vector<1x1x96xf32> to vector<1x96xf32>
    %10 = vector.broadcast %9 : vector<1x96xf32> to vector<8x96xf32>
    %11 = arith.addf %7, %10 : vector<8x96xf32>
    %12 = vector.shape_cast %11 : vector<8x96xf32> to vector<8x6x16xf32>
    %13 = tpu.transpose %12, [1, 0, 2] : vector<8x6x16xf32> -> vector<6x8x16xf32>
    %14 = vector.extract_strided_slice %13 {offsets = [0, 0, 0], sizes = [2, 8, 16], strides = [1, 1, 1]} : vector<6x8x16xf32> to vector<2x8x16xf32>
    %15 = vector.extract_strided_slice %13 {offsets = [2, 0, 0], sizes = [2, 8, 16], strides = [1, 1, 1]} : vector<6x8x16xf32> to vector<2x8x16xf32>
    %16 = vector.extract_strided_slice %13 {offsets = [4, 0, 0], sizes = [2, 8, 16], strides = [1, 1, 1]} : vector<6x8x16xf32> to vector<2x8x16xf32>
    %c0_8 = arith.constant 0 : index
    %c0_9 = arith.constant 0 : index
    %c0_10 = arith.constant 0 : index
    %17 = vector.load %arg3[%c0_8, %c0_9, %c0_10] : memref<1x1x8xf32, #tpu.memory_space<vmem>>, vector<1x1x8xf32>
    %18 = vector.shape_cast %17 : vector<1x1x8xf32> to vector<1x8xf32>
    %19 = arith.truncf %14 : vector<2x8x16xf32> to vector<2x8x16xbf16>
    %20 = arith.truncf %15 : vector<2x8x16xf32> to vector<2x8x16xbf16>
    "tpu.trace_start"() <{level = 10 : i32, message = "hqd,hkd->hqk"}> : () -> ()
    %cst_11 = arith.constant dense<0.000000e+00> : vector<2x8x8xf32>
    %21 = tpu.matmul %19, %20, %cst_11 {dimension_numbers = #tpu.dot_dimension_numbers<[2], [2], [1], [1], [0, 0, 0, 1, 1, 1], [0], [0]>} : vector<2x8x16xbf16>, vector<2x8x16xbf16>, vector<2x8x8xf32> -> vector<2x8x8xf32>
    "tpu.trace_stop"() : () -> ()
    %cst_12 = arith.constant 2.500000e-01 : f32
    %22 = vector.broadcast %cst_12 : f32 to vector<2x8x8xf32>
    %23 = arith.mulf %21, %22 : vector<2x8x8xf32>
    %24 = vector.shape_cast %18 : vector<1x8xf32> to vector<1x1x8xf32>
    %25 = vector.broadcast %24 : vector<1x1x8xf32> to vector<2x8x8xf32>
    %26 = arith.addf %23, %25 : vector<2x8x8xf32>
    %cst_13 = arith.constant dense<0xFF800000> : vector<2x8xf32>
    %27 = vector.multi_reduction <maximumf>, %26, %cst_13 [2] : vector<2x8x8xf32> to vector<2x8xf32>
    %28 = vector.shape_cast %27 : vector<2x8xf32> to vector<2x8x1xf32>
    %29 = vector.broadcast %28 : vector<2x8x1xf32> to vector<2x8x8xf32>
    %30 = arith.subf %26, %29 : vector<2x8x8xf32>
    %31 = math.exp %30 : vector<2x8x8xf32>
    %cst_14 = arith.constant dense<0.000000e+00> : vector<2x8xf32>
    %32 = vector.multi_reduction <add>, %31, %cst_14 [2] : vector<2x8x8xf32> to vector<2x8xf32>
    %33 = vector.shape_cast %32 : vector<2x8xf32> to vector<2x8x1xf32>
    %34 = tpu.reciprocal %33 {approx = true} : vector<2x8x1xf32> -> vector<2x8x1xf32>
    %35 = vector.broadcast %34 : vector<2x8x1xf32> to vector<2x8x8xf32>
    %36 = arith.mulf %31, %35 : vector<2x8x8xf32>
    %37 = arith.truncf %36 : vector<2x8x8xf32> to vector<2x8x8xbf16>
    %38 = arith.truncf %16 : vector<2x8x16xf32> to vector<2x8x16xbf16>
    "tpu.trace_start"() <{level = 10 : i32, message = "hqk,hkd->hqd"}> : () -> ()
    %cst_15 = arith.constant dense<0.000000e+00> : vector<2x8x16xf32>
    %39 = tpu.matmul %37, %38, %cst_15 {dimension_numbers = #tpu.dot_dimension_numbers<[2], [1], [1], [2], [0, 0, 0, 1, 1, 2], [0], [0]>} : vector<2x8x8xbf16>, vector<2x8x16xbf16>, vector<2x8x16xf32> -> vector<2x8x16xf32>
    "tpu.trace_stop"() : () -> ()
    %40 = tpu.transpose %39, [1, 0, 2] : vector<2x8x16xf32> -> vector<8x2x16xf32>
    %41 = vector.shape_cast %40 : vector<8x2x16xf32> to vector<8x32xf32>
    %42 = arith.truncf %41 : vector<8x32xf32> to vector<8x32xbf16>
    %c0_16 = arith.constant 0 : index
    %c0_17 = arith.constant 0 : index
    %c0_18 = arith.constant 0 : index
    %43 = vector.load %arg8[%c0_16, %c0_17, %c0_18] : memref<1x32x32xbf16, #tpu.memory_space<vmem>>, vector<1x32x32xbf16>
    %44 = vector.shape_cast %43 : vector<1x32x32xbf16> to vector<32x32xbf16>
    %cst_19 = arith.constant dense<0.000000e+00> : vector<8x32xf32>
    %45 = tpu.matmul %42, %44, %cst_19 {dimension_numbers = #tpu.dot_dimension_numbers<[1], [0], [0], [1], [0, 0, 1, 1], [], []>} : vector<8x32xbf16>, vector<32x32xbf16>, vector<8x32xf32> -> vector<8x32xf32>
    %c0_20 = arith.constant 0 : index
    %c0_21 = arith.constant 0 : index
    %c0_22 = arith.constant 0 : index
    %46 = vector.load %arg9[%c0_20, %c0_21, %c0_22] : memref<1x1x32xf32, #tpu.memory_space<vmem>>, vector<1x1x32xf32>
    %47 = vector.shape_cast %46 : vector<1x1x32xf32> to vector<1x32xf32>
    %48 = vector.broadcast %47 : vector<1x32xf32> to vector<8x32xf32>
    %49 = arith.addf %45, %48 : vector<8x32xf32>
    %50 = arith.addf %3, %49 : vector<8x32xf32>
    %c0_23 = arith.constant 0 : index
    %c0_24 = arith.constant 0 : index
    %c0_25 = arith.constant 0 : index
    %51 = vector.load %arg10[%c0_23, %c0_24, %c0_25] : memref<1x1x32xf32, #tpu.memory_space<vmem>>, vector<1x1x32xf32>
    %52 = vector.shape_cast %51 : vector<1x1x32xf32> to vector<1x32xf32>
    %c0_26 = arith.constant 0 : index
    %c0_27 = arith.constant 0 : index
    %c0_28 = arith.constant 0 : index
    %53 = vector.load %arg11[%c0_26, %c0_27, %c0_28] : memref<1x1x32xf32, #tpu.memory_space<vmem>>, vector<1x1x32xf32>
    %54 = vector.shape_cast %53 : vector<1x1x32xf32> to vector<1x32xf32>
    %cst_29 = arith.constant dense<0.000000e+00> : vector<8xf32>
    %55 = vector.multi_reduction <add>, %50, %cst_29 [1] : vector<8x32xf32> to vector<8xf32>
    %56 = vector.shape_cast %55 : vector<8xf32> to vector<8x1xf32>
    %cst_30 = arith.constant 3.200000e+01 : f32
    %57 = vector.broadcast %cst_30 : f32 to vector<8x1xf32>
    %58 = arith.divf %56, %57 : vector<8x1xf32>
    %59 = vector.broadcast %58 : vector<8x1xf32> to vector<8x32xf32>
    %60 = arith.subf %50, %59 : vector<8x32xf32>
    %61 = arith.mulf %60, %60 : vector<8x32xf32>
    %cst_31 = arith.constant dense<0.000000e+00> : vector<8xf32>
    %62 = vector.multi_reduction <add>, %61, %cst_31 [1] : vector<8x32xf32> to vector<8xf32>
    %63 = vector.shape_cast %62 : vector<8xf32> to vector<8x1xf32>
    %cst_32 = arith.constant 3.200000e+01 : f32
    %64 = vector.broadcast %cst_32 : f32 to vector<8x1xf32>
    %65 = arith.divf %63, %64 : vector<8x1xf32>
    %66 = vector.broadcast %58 : vector<8x1xf32> to vector<8x32xf32>
    %67 = arith.subf %50, %66 : vector<8x32xf32>
    %cst_33 = arith.constant 9.99999974E-6 : f32
    %68 = vector.broadcast %cst_33 : f32 to vector<8x1xf32>
    %69 = arith.addf %65, %68 : vector<8x1xf32>
    %70 = math.rsqrt %69 : vector<8x1xf32>
    %71 = vector.broadcast %70 : vector<8x1xf32> to vector<8x32xf32>
    %72 = arith.mulf %67, %71 : vector<8x32xf32>
    %73 = vector.broadcast %52 : vector<1x32xf32> to vector<8x32xf32>
    %74 = arith.mulf %72, %73 : vector<8x32xf32>
    %75 = vector.broadcast %54 : vector<1x32xf32> to vector<8x32xf32>
    %76 = arith.addf %74, %75 : vector<8x32xf32>
    %77 = arith.truncf %76 : vector<8x32xf32> to vector<8x32xbf16>
    %c0_34 = arith.constant 0 : index
    %c0_35 = arith.constant 0 : index
    %c0_36 = arith.constant 0 : index
    %78 = vector.load %arg12[%c0_34, %c0_35, %c0_36] : memref<1x32x64xbf16, #tpu.memory_space<vmem>>, vector<1x32x64xbf16>
    %79 = vector.shape_cast %78 : vector<1x32x64xbf16> to vector<32x64xbf16>
    %cst_37 = arith.constant dense<0.000000e+00> : vector<8x64xf32>
    %80 = tpu.matmul %77, %79, %cst_37 {dimension_numbers = #tpu.dot_dimension_numbers<[1], [0], [0], [1], [0, 0, 1, 1], [], []>} : vector<8x32xbf16>, vector<32x64xbf16>, vector<8x64xf32> -> vector<8x64xf32>
    %c0_38 = arith.constant 0 : index
    %c0_39 = arith.constant 0 : index
    %c0_40 = arith.constant 0 : index
    %81 = vector.load %arg13[%c0_38, %c0_39, %c0_40] : memref<1x1x64xf32, #tpu.memory_space<vmem>>, vector<1x1x64xf32>
    %82 = vector.shape_cast %81 : vector<1x1x64xf32> to vector<1x64xf32>
    %83 = vector.broadcast %82 : vector<1x64xf32> to vector<8x64xf32>
    %84 = arith.addf %80, %83 : vector<8x64xf32>
    %cst_41 = arith.constant 5.000000e-01 : f32
    %85 = vector.broadcast %cst_41 : f32 to vector<8x64xf32>
    %86 = arith.mulf %85, %84 : vector<8x64xf32>
    %cst_42 = arith.constant 0.707106769 : f32
    %87 = vector.broadcast %cst_42 : f32 to vector<8x64xf32>
    %88 = arith.mulf %84, %87 : vector<8x64xf32>
    %89 = math.erf %88 : vector<8x64xf32>
    %cst_43 = arith.constant 1.000000e+00 : f32
    %90 = vector.broadcast %cst_43 : f32 to vector<8x64xf32>
    %91 = arith.addf %90, %89 : vector<8x64xf32>
    %92 = arith.mulf %86, %91 : vector<8x64xf32>
    %93 = arith.truncf %92 : vector<8x64xf32> to vector<8x64xbf16>
    %c0_44 = arith.constant 0 : index
    %c0_45 = arith.constant 0 : index
    %c0_46 = arith.constant 0 : index
    %94 = vector.load %arg14[%c0_44, %c0_45, %c0_46] : memref<1x64x32xbf16, #tpu.memory_space<vmem>>, vector<1x64x32xbf16>
    %95 = vector.shape_cast %94 : vector<1x64x32xbf16> to vector<64x32xbf16>
    %cst_47 = arith.constant dense<0.000000e+00> : vector<8x32xf32>
    %96 = tpu.matmul %93, %95, %cst_47 {dimension_numbers = #tpu.dot_dimension_numbers<[1], [0], [0], [1], [0, 0, 1, 1], [], []>} : vector<8x64xbf16>, vector<64x32xbf16>, vector<8x32xf32> -> vector<8x32xf32>
    %c0_48 = arith.constant 0 : index
    %c0_49 = arith.constant 0 : index
    %c0_50 = arith.constant 0 : index
    %97 = vector.load %arg15[%c0_48, %c0_49, %c0_50] : memref<1x1x32xf32, #tpu.memory_space<vmem>>, vector<1x1x32xf32>
    %98 = vector.shape_cast %97 : vector<1x1x32xf32> to vector<1x32xf32>
    %99 = vector.broadcast %98 : vector<1x32xf32> to vector<8x32xf32>
    %100 = arith.addf %96, %99 : vector<8x32xf32>
    %101 = arith.addf %76, %100 : vector<8x32xf32>
    %c0_51 = arith.constant 0 : index
    %c0_52 = arith.constant 0 : index
    %c0_53 = arith.constant 0 : index
    %102 = vector.load %arg16[%c0_51, %c0_52, %c0_53] : memref<1x1x32xf32, #tpu.memory_space<vmem>>, vector<1x1x32xf32>
    %103 = vector.shape_cast %102 : vector<1x1x32xf32> to vector<1x32xf32>
    %c0_54 = arith.constant 0 : index
    %c0_55 = arith.constant 0 : index
    %c0_56 = arith.constant 0 : index
    %104 = vector.load %arg17[%c0_54, %c0_55, %c0_56] : memref<1x1x32xf32, #tpu.memory_space<vmem>>, vector<1x1x32xf32>
    %105 = vector.shape_cast %104 : vector<1x1x32xf32> to vector<1x32xf32>
    %cst_57 = arith.constant dense<0.000000e+00> : vector<8xf32>
    %106 = vector.multi_reduction <add>, %101, %cst_57 [1] : vector<8x32xf32> to vector<8xf32>
    %107 = vector.shape_cast %106 : vector<8xf32> to vector<8x1xf32>
    %cst_58 = arith.constant 3.200000e+01 : f32
    %108 = vector.broadcast %cst_58 : f32 to vector<8x1xf32>
    %109 = arith.divf %107, %108 : vector<8x1xf32>
    %110 = vector.broadcast %109 : vector<8x1xf32> to vector<8x32xf32>
    %111 = arith.subf %101, %110 : vector<8x32xf32>
    %112 = arith.mulf %111, %111 : vector<8x32xf32>
    %cst_59 = arith.constant dense<0.000000e+00> : vector<8xf32>
    %113 = vector.multi_reduction <add>, %112, %cst_59 [1] : vector<8x32xf32> to vector<8xf32>
    %114 = vector.shape_cast %113 : vector<8xf32> to vector<8x1xf32>
    %cst_60 = arith.constant 3.200000e+01 : f32
    %115 = vector.broadcast %cst_60 : f32 to vector<8x1xf32>
    %116 = arith.divf %114, %115 : vector<8x1xf32>
    %117 = vector.broadcast %109 : vector<8x1xf32> to vector<8x32xf32>
    %118 = arith.subf %101, %117 : vector<8x32xf32>
    %cst_61 = arith.constant 9.99999974E-6 : f32
    %119 = vector.broadcast %cst_61 : f32 to vector<8x1xf32>
    %120 = arith.addf %116, %119 : vector<8x1xf32>
    %121 = math.rsqrt %120 : vector<8x1xf32>
    %122 = vector.broadcast %121 : vector<8x1xf32> to vector<8x32xf32>
    %123 = arith.mulf %118, %122 : vector<8x32xf32>
    %124 = vector.broadcast %103 : vector<1x32xf32> to vector<8x32xf32>
    %125 = arith.mulf %123, %124 : vector<8x32xf32>
    %126 = vector.broadcast %105 : vector<1x32xf32> to vector<8x32xf32>
    %127 = arith.addf %125, %126 : vector<8x32xf32>
    %c0_62 = arith.constant 0 : index
    %c0_63 = arith.constant 0 : index
    %128 = vector.load %arg24[%c0_62, %c0_63] : memref<8x32xf32, #tpu.memory_space<vmem>>, vector<8x32xf32>
    tpu.vector_store %arg24[%c0_62, %c0_63], %127 {strides = array<i32>} : memref<8x32xf32, #tpu.memory_space<vmem>>, vector<8x32xf32>,
    %c1_i32 = arith.constant 1 : i32
    %129 = arith.cmpi eq, %arg1, %c1_i32 : i32
    %130 = arith.extui %129 : i1 to i32
    %c0_i32_64 = arith.constant 0 : i32
    %131 = arith.cmpi ne, %130, %c0_i32_64 : i32
    scf.if %131 {
      %132 = vector.extract_strided_slice %127 {offsets = [0, 0], sizes = [1, 32], strides = [1, 1]} : vector<8x32xf32> to vector<1x32xf32>
      %133 = arith.truncf %132 : vector<1x32xf32> to vector<1x32xbf16>
      %c0_65 = arith.constant 0 : index
      %c0_66 = arith.constant 0 : index
      %134 = vector.load %arg18[%c0_65, %c0_66] : memref<32x32xbf16, #tpu.memory_space<vmem>>, vector<32x32xbf16>
      %cst_67 = arith.constant dense<0.000000e+00> : vector<1x32xf32>
      %135 = tpu.matmul %133, %134, %cst_67 {dimension_numbers = #tpu.dot_dimension_numbers<[1], [0], [0], [1], [0, 0, 1, 1], [], []>} : vector<1x32xbf16>, vector<32x32xbf16>, vector<1x32xf32> -> vector<1x32xf32>
      %c0_68 = arith.constant 0 : index
      %c0_69 = arith.constant 0 : index
      %136 = vector.load %arg19[%c0_68, %c0_69] : memref<1x32xf32, #tpu.memory_space<vmem>>, vector<1x32xf32>
      %137 = arith.addf %135, %136 : vector<1x32xf32>
      %138 = math.tanh %137 : vector<1x32xf32>
      %c0_70 = arith.constant 0 : index
      %c0_71 = arith.constant 0 : index
      %139 = vector.load %arg20[%c0_70, %c0_71] : memref<1x32xf32, #tpu.memory_space<vmem>>, vector<1x32xf32>
      %140 = arith.mulf %138, %139 : vector<1x32xf32>
      %cst_72 = arith.constant dense<0.000000e+00> : vector<1xf32>
      %141 = vector.multi_reduction <add>, %140, %cst_72 [1] : vector<1x32xf32> to vector<1xf32>
      %142 = vector.shape_cast %141 : vector<1xf32> to vector<1x1xf32>
      %c0_73 = arith.constant 0 : index
      %c0_74 = arith.constant 0 : index
      %143 = vector.load %arg21[%c0_73, %c0_74] : memref<1x1xf32, #tpu.memory_space<vmem>>, vector<1x1xf32>
      %144 = arith.addf %142, %143 : vector<1x1xf32>
      %145 = vector.shape_cast %138 : vector<1x32xf32> to vector<1x1x32xf32>
      %c0_75 = arith.constant 0 : index
      %c0_76 = arith.constant 0 : index
      %c0_77 = arith.constant 0 : index
      %146 = vector.load %arg22[%c0_75, %c0_76, %c0_77] : memref<1x1x32xf32, #tpu.memory_space<vmem>>, vector<1x1x32xf32>
      tpu.vector_store %arg22[%c0_75, %c0_76, %c0_77], %145 {strides = array<i32>} : memref<1x1x32xf32, #tpu.memory_space<vmem>>, vector<1x1x32xf32>,
      %147 = vector.shape_cast %144 : vector<1x1xf32> to vector<1x1x1xf32>
      %c0_78 = arith.constant 0 : index
      %c0_79 = arith.constant 0 : index
      %c0_80 = arith.constant 0 : index
      %148 = vector.load %arg23[%c0_78, %c0_79, %c0_80] : memref<1x1x1xf32, #tpu.memory_space<vmem>>, vector<1x1x1xf32>
      tpu.vector_store %arg23[%c0_78, %c0_79, %c0_80], %147 {strides = array<i32>} : memref<1x1x1xf32, #tpu.memory_space<vmem>>, vector<1x1x1xf32>,
    } else {
    }
    return
  }
  func.func @transform_0(%arg0: i32, %arg1: i32) -> (i32, i32, i32) {
    %c0_i32 = arith.constant 0 : i32
    %c0_i32_0 = arith.constant 0 : i32
    %c0_i32_1 = arith.constant 0 : i32
    return %arg0, %c0_i32, %c0_i32_0 : i32, i32, i32
  }
  func.func @transform_1(%arg0: i32, %arg1: i32) -> (i32, i32, i32) {
    %c0_i32 = arith.constant 0 : i32
    %c0_i32_0 = arith.constant 0 : i32
    %c0_i32_1 = arith.constant 0 : i32
    return %arg0, %c0_i32, %c0_i32_0 : i32, i32, i32
  }
  func.func @transform_2(%arg0: i32, %arg1: i32) -> (i32, i32) {
    %c0_i32 = arith.constant 0 : i32
    %c0_i32_0 = arith.constant 0 : i32
    %c0_i32_1 = arith.constant 0 : i32
    return %c0_i32, %c0_i32_0 : i32, i32
  }
  func.func @transform_3(%arg0: i32, %arg1: i32) -> (i32, i32) {
    %c0_i32 = arith.constant 0 : i32
    %c0_i32_0 = arith.constant 0 : i32
    %c0_i32_1 = arith.constant 0 : i32
    return %c0_i32, %c0_i32_0 : i32, i32
  }
  func.func @transform_4(%arg0: i32, %arg1: i32) -> (i32, i32, i32) {
    %c0_i32 = arith.constant 0 : i32
    %c0_i32_0 = arith.constant 0 : i32
    %c0_i32_1 = arith.constant 0 : i32
    return %arg1, %c0_i32, %c0_i32_0 : i32, i32, i32
  }
  func.func @transform_5(%arg0: i32, %arg1: i32) -> (i32, i32, i32) {
    %c0_i32 = arith.constant 0 : i32
    %c0_i32_0 = arith.constant 0 : i32
    %c0_i32_1 = arith.constant 0 : i32
    return %arg1, %c0_i32, %c0_i32_0 : i32, i32, i32
  }
  func.func @transform_6(%arg0: i32, %arg1: i32) -> (i32, i32, i32) {
    %c0_i32 = arith.constant 0 : i32
    %c0_i32_0 = arith.constant 0 : i32
    %c0_i32_1 = arith.constant 0 : i32
    return %arg1, %c0_i32, %c0_i32_0 : i32, i32, i32
  }
  func.func @transform_7(%arg0: i32, %arg1: i32) -> (i32, i32, i32) {
    %c0_i32 = arith.constant 0 : i32
    %c0_i32_0 = arith.constant 0 : i32
    %c0_i32_1 = arith.constant 0 : i32
    return %arg1, %c0_i32, %c0_i32_0 : i32, i32, i32
  }
  func.func @transform_8(%arg0: i32, %arg1: i32) -> (i32, i32, i32) {
    %c0_i32 = arith.constant 0 : i32
    %c0_i32_0 = arith.constant 0 : i32
    %c0_i32_1 = arith.constant 0 : i32
    return %arg1, %c0_i32, %c0_i32_0 : i32, i32, i32
  }
  func.func @transform_9(%arg0: i32, %arg1: i32) -> (i32, i32, i32) {
    %c0_i32 = arith.constant 0 : i32
    %c0_i32_0 = arith.constant 0 : i32
    %c0_i32_1 = arith.constant 0 : i32
    return %arg1, %c0_i32, %c0_i32_0 : i32, i32, i32
  }
  func.func @transform_10(%arg0: i32, %arg1: i32) -> (i32, i32, i32) {
    %c0_i32 = arith.constant 0 : i32
    %c0_i32_0 = arith.constant 0 : i32
    %c0_i32_1 = arith.constant 0 : i32
    return %arg1, %c0_i32, %c0_i32_0 : i32, i32, i32
  }
  func.func @transform_11(%arg0: i32, %arg1: i32) -> (i32, i32, i32) {
    %c0_i32 = arith.constant 0 : i32
    %c0_i32_0 = arith.constant 0 : i32
    %c0_i32_1 = arith.constant 0 : i32
    return %arg1, %c0_i32, %c0_i32_0 : i32, i32, i32
  }
  func.func @transform_12(%arg0: i32, %arg1: i32) -> (i32, i32, i32) {
    %c0_i32 = arith.constant 0 : i32
    %c0_i32_0 = arith.constant 0 : i32
    %c0_i32_1 = arith.constant 0 : i32
    return %arg1, %c0_i32, %c0_i32_0 : i32, i32, i32
  }
  func.func @transform_13(%arg0: i32, %arg1: i32) -> (i32, i32, i32) {
    %c0_i32 = arith.constant 0 : i32
    %c0_i32_0 = arith.constant 0 : i32
    %c0_i32_1 = arith.constant 0 : i32
    return %arg1, %c0_i32, %c0_i32_0 : i32, i32, i32
  }
  func.func @transform_14(%arg0: i32, %arg1: i32) -> (i32, i32, i32) {
    %c0_i32 = arith.constant 0 : i32
    %c0_i32_0 = arith.constant 0 : i32
    %c0_i32_1 = arith.constant 0 : i32
    return %arg1, %c0_i32, %c0_i32_0 : i32, i32, i32
  }
  func.func @transform_15(%arg0: i32, %arg1: i32) -> (i32, i32, i32) {
    %c0_i32 = arith.constant 0 : i32
    %c0_i32_0 = arith.constant 0 : i32
    %c0_i32_1 = arith.constant 0 : i32
    return %arg1, %c0_i32, %c0_i32_0 : i32, i32, i32
  }
  func.func @transform_16(%arg0: i32, %arg1: i32) -> (i32, i32) {
    %c0_i32 = arith.constant 0 : i32
    %c0_i32_0 = arith.constant 0 : i32
    %c0_i32_1 = arith.constant 0 : i32
    return %c0_i32, %c0_i32_0 : i32, i32
  }
  func.func @transform_17(%arg0: i32, %arg1: i32) -> (i32, i32) {
    %c0_i32 = arith.constant 0 : i32
    %c0_i32_0 = arith.constant 0 : i32
    %c0_i32_1 = arith.constant 0 : i32
    return %c0_i32, %c0_i32_0 : i32, i32
  }
  func.func @transform_18(%arg0: i32, %arg1: i32) -> (i32, i32) {
    %c0_i32 = arith.constant 0 : i32
    %c0_i32_0 = arith.constant 0 : i32
    %c0_i32_1 = arith.constant 0 : i32
    return %c0_i32, %c0_i32_0 : i32, i32
  }
  func.func @transform_19(%arg0: i32, %arg1: i32) -> (i32, i32) {
    %c0_i32 = arith.constant 0 : i32
    %c0_i32_0 = arith.constant 0 : i32
    %c0_i32_1 = arith.constant 0 : i32
    return %c0_i32, %c0_i32_0 : i32, i32
  }
  func.func @transform_20(%arg0: i32, %arg1: i32) -> (i32, i32, i32) {
    %c0_i32 = arith.constant 0 : i32
    %c0_i32_0 = arith.constant 0 : i32
    %c0_i32_1 = arith.constant 0 : i32
    return %arg0, %c0_i32, %c0_i32_0 : i32, i32, i32
  }
  func.func @transform_21(%arg0: i32, %arg1: i32) -> (i32, i32, i32) {
    %c0_i32 = arith.constant 0 : i32
    %c0_i32_0 = arith.constant 0 : i32
    %c0_i32_1 = arith.constant 0 : i32
    return %arg0, %c0_i32, %c0_i32_0 : i32, i32, i32
  }
}

</mosaic_0001>

<llo_original>
// kernel: roberta_pooled_output.1
$region0: #{roberta_pooled_output.1}
  #allocation0 [shape = 'u32[]', space=smem, size = 0x4, offset = 0x4, fixed_abs, tag = 'smem constant byte address 0x4 - core index']
  #allocation1 [shape = 'u32[144,128]{1,0:T(1,128)}', space=vmem, size = 0x12000, scoped, tag = 'internal scratch']
  #allocation2 [shape = 'f32[8,32]{1,0:T(8,128)}', space=vmem, size = 0x1000, scoped, tag = 'scratch operand']
  #allocation3 [shape = 'f32[1,1]{1,0:T(1,128)S(1)}', space=vmem, size = 0x200, scoped, tag = 'scoped memory for roberta_pooled_output.1']
  %s0 = inlined_call_operand.vmem [shape: f32[2,8,32], index: 0, kind: input, shape index: {}]
  %s1 = inlined_call_operand.vmem [shape: f32[2,1,8], index: 1, kind: input, shape index: {}]
  %s2 = inlined_call_operand.vmem [shape: f32[1,32], index: 2, kind: input, shape index: {}]
  %s3 = inlined_call_operand.vmem [shape: f32[1,32], index: 3, kind: input, shape index: {}]
  %s4 = inlined_call_operand.vmem [shape: bf16[2,32,96], index: 4, kind: input, shape index: {}]
  %s5 = inlined_call_operand.vmem [shape: f32[2,1,96], index: 5, kind: input, shape index: {}]
  %s6 = inlined_call_operand.vmem [shape: bf16[2,32,32], index: 6, kind: input, shape index: {}]
  %s7 = inlined_call_operand.vmem [shape: f32[2,1,32], index: 7, kind: input, shape index: {}]
  %s8 = inlined_call_operand.vmem [shape: f32[2,1,32], index: 8, kind: input, shape index: {}]
  %s9 = inlined_call_operand.vmem [shape: f32[2,1,32], index: 9, kind: input, shape index: {}]
  %s10 = inlined_call_operand.vmem [shape: bf16[2,32,64], index: 10, kind: input, shape index: {}]
  %s11 = inlined_call_operand.vmem [shape: f32[2,1,64], index: 11, kind: input, shape index: {}]
  %s12 = inlined_call_operand.vmem [shape: bf16[2,64,32], index: 12, kind: input, shape index: {}]
  %s13 = inlined_call_operand.vmem [shape: f32[2,1,32], index: 13, kind: input, shape index: {}]
  %s14 = inlined_call_operand.vmem [shape: f32[2,1,32], index: 14, kind: input, shape index: {}]
  %s15 = inlined_call_operand.vmem [shape: f32[2,1,32], index: 15, kind: input, shape index: {}]
  %s16 = inlined_call_operand.vmem [shape: bf16[32,32], index: 16, kind: input, shape index: {}]
  %s17 = inlined_call_operand.vmem [shape: f32[1,32], index: 17, kind: input, shape index: {}]
  %s18 = inlined_call_operand.vmem [shape: f32[1,32], index: 18, kind: input, shape index: {}]
  %s19 = inlined_call_operand.<no memory space> [shape: f32[1,1], index: 19, kind: input, shape index: {}]
  %s20 = inlined_call_operand.hbm [shape: f32[2,1,32], index: 20, kind: output, shape index: {0}]
  %s21 = inlined_call_operand.vmem [shape: f32[2,1,1], index: 21, kind: output, shape index: {1}]
  %22 = xla_tuple %s20, %s21
  %s23 = sld [smem:[#allocation0]]
  $region129: #{roberta_pooled_output.1} parent=0
    _
  %s25 = ssub.s32 1, %s23
  %s26 = scalar_select 0, %s25, %s23
  %v27 = vstv %s19
  %28 = vst [vmem:[#allocation3] sm:$0x1] %v27
  $region1: #{roberta_pooled_output.1} parent=0
    #allocation4 [shape = 'u8[1024]{0}', space=vmem, size = 0x400, scoped, tag = 'output window, operand 0']
    #allocation5 [shape = 's32[2]{0}', space=sflag, size = 0x8, scoped, tag = 'scoped memory for roberta_pooled_output.1']
    %29 = vsyncpa [#allocation5], 0
    %s30 = scalar_lea.sflag [#allocation5], 1
    %31 = vsyncpa %s30, 0
    loop: start=0, step=1, limit=6
    $region2: #{roberta_pooled_output.1} parent=1 // loop_pre_header
      _
    $region3: #{roberta_pooled_output.1} parent=1 // loop_header
      %s33 = sphi 0, %s37
      %p34 = scmp.ge.s32.totalorder %s33, 6
      %s40 = sphi 0, %s52
      %s41 = sphi 0, %s48
      %s42 = sphi 0, %s40
      %s43 = sphi 0, %s41
      %s44 = sphi 0, %s42
      %s45 = sphi 0, %s43
      %s55 = sphi 0, %s57
      %s58 = sphi 0, %s55
      %s59 = sphi 0, %s58
      %s75 = sphi 0, %s59
      %s81 = sphi 0, %s83
      %s84 = sphi 0, %s81
      %s85 = sphi 0, %s84
      %s101 = sphi 0, %s85
      %s105 = sphi 0, %s105
      %s107 = sphi 0, %s105
      %s108 = sphi 0, %s107
      %s122 = sphi 0, %s108
      %s126 = sphi 0, %s126
      %s128 = sphi 0, %s126
      %s129 = sphi 0, %s128
      %s143 = sphi 0, %s129
      %s149 = sphi 0, %s151
      %s152 = sphi 0, %s149
      %s153 = sphi 0, %s152
      %s169 = sphi 0, %s153
      %s175 = sphi 0, %s177
      %s178 = sphi 0, %s175
      %s179 = sphi 0, %s178
      %s195 = sphi 0, %s179
      %s201 = sphi 0, %s203
      %s204 = sphi 0, %s201
      %s205 = sphi 0, %s204
      %s221 = sphi 0, %s205
      %s227 = sphi 0, %s229
      %s230 = sphi 0, %s227
      %s231 = sphi 0, %s230
      %s247 = sphi 0, %s231
      %s253 = sphi 0, %s255
      %s256 = sphi 0, %s253
      %s257 = sphi 0, %s256
      %s273 = sphi 0, %s257
      %s279 = sphi 0, %s281
      %s282 = sphi 0, %s279
      %s283 = sphi 0, %s282
      %s299 = sphi 0, %s283
      %s305 = sphi 0, %s307
      %s308 = sphi 0, %s305
      %s309 = sphi 0, %s308
      %s325 = sphi 0, %s309
      %s331 = sphi 0, %s333
      %s334 = sphi 0, %s331
      %s335 = sphi 0, %s334
      %s351 = sphi 0, %s335
      %s357 = sphi 0, %s359
      %s360 = sphi 0, %s357
      %s361 = sphi 0, %s360
      %s377 = sphi 0, %s361
      %s383 = sphi 0, %s385
      %s386 = sphi 0, %s383
      %s387 = sphi 0, %s386
      %s403 = sphi 0, %s387
      %s409 = sphi 0, %s411
      %s412 = sphi 0, %s409
      %s413 = sphi 0, %s412
      %s429 = sphi 0, %s413
      %s435 = sphi 0, %s437
      %s438 = sphi 0, %s435
      %s439 = sphi 0, %s438
      %s455 = sphi 0, %s439
      %s459 = sphi 0, %s459
      %s461 = sphi 0, %s459
      %s462 = sphi 0, %s461
      %s476 = sphi 0, %s462
      %s480 = sphi 0, %s480
      %s482 = sphi 0, %s480
      %s483 = sphi 0, %s482
      %s497 = sphi 0, %s483
      %s501 = sphi 0, %s501
      %s503 = sphi 0, %s501
      %s504 = sphi 0, %s503
      %s518 = sphi 0, %s504
      %s522 = sphi 0, %s522
      %s524 = sphi 0, %s522
      %s525 = sphi 0, %s524
      %s539 = sphi 0, %s525
      %s545 = sphi 0, %s547
      %s548 = sphi 0, %s545
      %s549 = sphi 0, %s548
      %s565 = sphi 0, %s549
      %s571 = sphi 0, %s573
      %s574 = sphi 0, %s571
      %s575 = sphi 0, %s574
      %s591 = sphi 0, %s575
    $region4: #{roberta_pooled_output.1} parent=1 // loop_header_branch
      %36 = sbr.rel (%p34) target = $region8
    $region5: #{roberta_pooled_output.1} parent=1 // loop_body
      %s38 = ssub.s32 %s33, 1
      %s39 = ssub.s32 %s33, 2
      %s46 = sadd.s32 1, %s41
      %p47 = scmp.ge.s32.totalorder %s46, 2
      %s48 = scalar_select %p47, 0, %s46
      %s49 = sadd.s32 1, %s40
      %s50 = scalar_select %p47, %s49, %s40
      %p51 = scmp.ge.s32.totalorder %s50, 2
      %s52 = scalar_select %p51, 0, %s50
      %s53 = ssub.s32 %s40, %s52
      %p54 = scmp.eq.s32.totalorder %s53, 0
      %s56 = sadd.s32 %s55, 1
      %s57 = scalar_select %p54, %s55, %s56
      %p60 = pneg %p54
      %p61 = scmp.eq.s32.totalorder %s33, 3
      %p62 = por %p60, %p61
      %p63 = scmp.ne.s32.totalorder %s55, %s58
      %p64 = scmp.eq.s32.totalorder %s33, 0
      %p65 = por %p63, %p64
      %p66 = scmp.ne.s32.totalorder %s55, %s58
      %p67 = scmp.eq.s32.totalorder %s38, 3
      %p68 = por %p66, %p67
      %p69 = scmp.ne.s32.totalorder %s58, %s59
      %p70 = scmp.eq.s32.totalorder %s38, 0
      %p71 = por %p69, %p70
      %p72 = scmp.ne.s32.totalorder %s58, %s59
      %p73 = scmp.eq.s32.totalorder %s39, 3
      %p74 = por %p72, %p73
      %p76 = scmp.ne.s32.totalorder %s59, %s75
      %p77 = scmp.eq.s32.totalorder %s39, 0
      %p78 = por %p76, %p77
      %s79 = ssub.s32 %s40, %s52
      %p80 = scmp.eq.s32.totalorder %s79, 0
      %s82 = sadd.s32 %s81, 1
      %s83 = scalar_select %p80, %s81, %s82
      %p86 = pneg %p80
      %p87 = scmp.eq.s32.totalorder %s33, 3
      %p88 = por %p86, %p87
      %p89 = scmp.ne.s32.totalorder %s81, %s84
      %p90 = scmp.eq.s32.totalorder %s33, 0
      %p91 = por %p89, %p90
      %p92 = scmp.ne.s32.totalorder %s81, %s84
      %p93 = scmp.eq.s32.totalorder %s38, 3
      %p94 = por %p92, %p93
      %p95 = scmp.ne.s32.totalorder %s84, %s85
      %p96 = scmp.eq.s32.totalorder %s38, 0
      %p97 = por %p95, %p96
      %p98 = scmp.ne.s32.totalorder %s84, %s85
      %p99 = scmp.eq.s32.totalorder %s39, 3
      %p100 = por %p98, %p99
      %p102 = scmp.ne.s32.totalorder %s85, %s101
      %p103 = scmp.eq.s32.totalorder %s39, 0
      %p104 = por %p102, %p103
      %s106 = sadd.s32 %s105, 1
      %p109 = scmp.eq.s32.totalorder %s33, 3
      %p110 = scmp.ne.s32.totalorder %s105, %s107
      %p111 = scmp.eq.s32.totalorder %s33, 0
      %p112 = por %p110, %p111
      %p113 = scmp.ne.s32.totalorder %s105, %s107
      %p114 = scmp.eq.s32.totalorder %s38, 3
      %p115 = por %p113, %p114
      %p116 = scmp.ne.s32.totalorder %s107, %s108
      %p117 = scmp.eq.s32.totalorder %s38, 0
      %p118 = por %p116, %p117
      %p119 = scmp.ne.s32.totalorder %s107, %s108
      %p120 = scmp.eq.s32.totalorder %s39, 3
      %p121 = por %p119, %p120
      %p123 = scmp.ne.s32.totalorder %s108, %s122
      %p124 = scmp.eq.s32.totalorder %s39, 0
      %p125 = por %p123, %p124
      %s127 = sadd.s32 %s126, 1
      %p130 = scmp.eq.s32.totalorder %s33, 3
      %p131 = scmp.ne.s32.totalorder %s126, %s128
      %p132 = scmp.eq.s32.totalorder %s33, 0
      %p133 = por %p131, %p132
      %p134 = scmp.ne.s32.totalorder %s126, %s128
      %p135 = scmp.eq.s32.totalorder %s38, 3
      %p136 = por %p134, %p135
      %p137 = scmp.ne.s32.totalorder %s128, %s129
      %p138 = scmp.eq.s32.totalorder %s38, 0
      %p139 = por %p137, %p138
      %p140 = scmp.ne.s32.totalorder %s128, %s129
      %p141 = scmp.eq.s32.totalorder %s39, 3
      %p142 = por %p140, %p141
      %p144 = scmp.ne.s32.totalorder %s129, %s143
      %p145 = scmp.eq.s32.totalorder %s39, 0
      %p146 = por %p144, %p145
      %s147 = ssub.s32 %s41, %s48
      %p148 = scmp.eq.s32.totalorder %s147, 0
      %s150 = sadd.s32 %s149, 1
      %s151 = scalar_select %p148, %s149, %s150
      %p154 = pneg %p148
      %p155 = scmp.eq.s32.totalorder %s33, 3
      %p156 = por %p154, %p155
      %p157 = scmp.ne.s32.totalorder %s149, %s152
      %p158 = scmp.eq.s32.totalorder %s33, 0
      %p159 = por %p157, %p158
      %p160 = scmp.ne.s32.totalorder %s149, %s152
      %p161 = scmp.eq.s32.totalorder %s38, 3
      %p162 = por %p160, %p161
      %p163 = scmp.ne.s32.totalorder %s152, %s153
      %p164 = scmp.eq.s32.totalorder %s38, 0
      %p165 = por %p163, %p164
      %p166 = scmp.ne.s32.totalorder %s152, %s153
      %p167 = scmp.eq.s32.totalorder %s39, 3
      %p168 = por %p166, %p167
      %p170 = scmp.ne.s32.totalorder %s153, %s169
      %p171 = scmp.eq.s32.totalorder %s39, 0
      %p172 = por %p170, %p171
      %s173 = ssub.s32 %s41, %s48
      %p174 = scmp.eq.s32.totalorder %s173, 0
      %s176 = sadd.s32 %s175, 1
      %s177 = scalar_select %p174, %s175, %s176
      %p180 = pneg %p174
      %p181 = scmp.eq.s32.totalorder %s33, 3
      %p182 = por %p180, %p181
      %p183 = scmp.ne.s32.totalorder %s175, %s178
      %p184 = scmp.eq.s32.totalorder %s33, 0
      %p185 = por %p183, %p184
      %p186 = scmp.ne.s32.totalorder %s175, %s178
      %p187 = scmp.eq.s32.totalorder %s38, 3
      %p188 = por %p186, %p187
      %p189 = scmp.ne.s32.totalorder %s178, %s179
      %p190 = scmp.eq.s32.totalorder %s38, 0
      %p191 = por %p189, %p190
      %p192 = scmp.ne.s32.totalorder %s178, %s179
      %p193 = scmp.eq.s32.totalorder %s39, 3
      %p194 = por %p192, %p193
      %p196 = scmp.ne.s32.totalorder %s179, %s195
      %p197 = scmp.eq.s32.totalorder %s39, 0
      %p198 = por %p196, %p197
      %s199 = ssub.s32 %s41, %s48
      %p200 = scmp.eq.s32.totalorder %s199, 0
      %s202 = sadd.s32 %s201, 1
      %s203 = scalar_select %p200, %s201, %s202
      %p206 = pneg %p200
      %p207 = scmp.eq.s32.totalorder %s33, 3
      %p208 = por %p206, %p207
      %p209 = scmp.ne.s32.totalorder %s201, %s204
      %p210 = scmp.eq.s32.totalorder %s33, 0
      %p211 = por %p209, %p210
      %p212 = scmp.ne.s32.totalorder %s201, %s204
      %p213 = scmp.eq.s32.totalorder %s38, 3
      %p214 = por %p212, %p213
      %p215 = scmp.ne.s32.totalorder %s204, %s205
      %p216 = scmp.eq.s32.totalorder %s38, 0
      %p217 = por %p215, %p216
      %p218 = scmp.ne.s32.totalorder %s204, %s205
      %p219 = scmp.eq.s32.totalorder %s39, 3
      %p220 = por %p218, %p219
      %p222 = scmp.ne.s32.totalorder %s205, %s221
      %p223 = scmp.eq.s32.totalorder %s39, 0
      %p224 = por %p222, %p223
      %s225 = ssub.s32 %s41, %s48
      %p226 = scmp.eq.s32.totalorder %s225, 0
      %s228 = sadd.s32 %s227, 1
      %s229 = scalar_select %p226, %s227, %s228
      %p232 = pneg %p226
      %p233 = scmp.eq.s32.totalorder %s33, 3
      %p234 = por %p232, %p233
      %p235 = scmp.ne.s32.totalorder %s227, %s230
      %p236 = scmp.eq.s32.totalorder %s33, 0
      %p237 = por %p235, %p236
      %p238 = scmp.ne.s32.totalorder %s227, %s230
      %p239 = scmp.eq.s32.totalorder %s38, 3
      %p240 = por %p238, %p239
      %p241 = scmp.ne.s32.totalorder %s230, %s231
      %p242 = scmp.eq.s32.totalorder %s38, 0
      %p243 = por %p241, %p242
      %p244 = scmp.ne.s32.totalorder %s230, %s231
      %p245 = scmp.eq.s32.totalorder %s39, 3
      %p246 = por %p244, %p245
      %p248 = scmp.ne.s32.totalorder %s231, %s247
      %p249 = scmp.eq.s32.totalorder %s39, 0
      %p250 = por %p248, %p249
      %s251 = ssub.s32 %s41, %s48
      %p252 = scmp.eq.s32.totalorder %s251, 0
      %s254 = sadd.s32 %s253, 1
      %s255 = scalar_select %p252, %s253, %s254
      %p258 = pneg %p252
      %p259 = scmp.eq.s32.totalorder %s33, 3
      %p260 = por %p258, %p259
      %p261 = scmp.ne.s32.totalorder %s253, %s256
      %p262 = scmp.eq.s32.totalorder %s33, 0
      %p263 = por %p261, %p262
      %p264 = scmp.ne.s32.totalorder %s253, %s256
      %p265 = scmp.eq.s32.totalorder %s38, 3
      %p266 = por %p264, %p265
      %p267 = scmp.ne.s32.totalorder %s256, %s257
      %p268 = scmp.eq.s32.totalorder %s38, 0
      %p269 = por %p267, %p268
      %p270 = scmp.ne.s32.totalorder %s256, %s257
      %p271 = scmp.eq.s32.totalorder %s39, 3
      %p272 = por %p270, %p271
      %p274 = scmp.ne.s32.totalorder %s257, %s273
      %p275 = scmp.eq.s32.totalorder %s39, 0
      %p276 = por %p274, %p275
      %s277 = ssub.s32 %s41, %s48
      %p278 = scmp.eq.s32.totalorder %s277, 0
      %s280 = sadd.s32 %s279, 1
      %s281 = scalar_select %p278, %s279, %s280
      %p284 = pneg %p278
      %p285 = scmp.eq.s32.totalorder %s33, 3
      %p286 = por %p284, %p285
      %p287 = scmp.ne.s32.totalorder %s279, %s282
      %p288 = scmp.eq.s32.totalorder %s33, 0
      %p289 = por %p287, %p288
      %p290 = scmp.ne.s32.totalorder %s279, %s282
      %p291 = scmp.eq.s32.totalorder %s38, 3
      %p292 = por %p290, %p291
      %p293 = scmp.ne.s32.totalorder %s282, %s283
      %p294 = scmp.eq.s32.totalorder %s38, 0
      %p295 = por %p293, %p294
      %p296 = scmp.ne.s32.totalorder %s282, %s283
      %p297 = scmp.eq.s32.totalorder %s39, 3
      %p298 = por %p296, %p297
      %p300 = scmp.ne.s32.totalorder %s283, %s299
      %p301 = scmp.eq.s32.totalorder %s39, 0
      %p302 = por %p300, %p301
      %s303 = ssub.s32 %s41, %s48
      %p304 = scmp.eq.s32.totalorder %s303, 0
      %s306 = sadd.s32 %s305, 1
      %s307 = scalar_select %p304, %s305, %s306
      %p310 = pneg %p304
      %p311 = scmp.eq.s32.totalorder %s33, 3
      %p312 = por %p310, %p311
      %p313 = scmp.ne.s32.totalorder %s305, %s308
      %p314 = scmp.eq.s32.totalorder %s33, 0
      %p315 = por %p313, %p314
      %p316 = scmp.ne.s32.totalorder %s305, %s308
      %p317 = scmp.eq.s32.totalorder %s38, 3
      %p318 = por %p316, %p317
      %p319 = scmp.ne.s32.totalorder %s308, %s309
      %p320 = scmp.eq.s32.totalorder %s38, 0
      %p321 = por %p319, %p320
      %p322 = scmp.ne.s32.totalorder %s308, %s309
      %p323 = scmp.eq.s32.totalorder %s39, 3
      %p324 = por %p322, %p323
      %p326 = scmp.ne.s32.totalorder %s309, %s325
      %p327 = scmp.eq.s32.totalorder %s39, 0
      %p328 = por %p326, %p327
      %s329 = ssub.s32 %s41, %s48
      %p330 = scmp.eq.s32.totalorder %s329, 0
      %s332 = sadd.s32 %s331, 1
      %s333 = scalar_select %p330, %s331, %s332
      %p336 = pneg %p330
      %p337 = scmp.eq.s32.totalorder %s33, 3
      %p338 = por %p336, %p337
      %p339 = scmp.ne.s32.totalorder %s331, %s334
      %p340 = scmp.eq.s32.totalorder %s33, 0
      %p341 = por %p339, %p340
      %p342 = scmp.ne.s32.totalorder %s331, %s334
      %p343 = scmp.eq.s32.totalorder %s38, 3
      %p344 = por %p342, %p343
      %p345 = scmp.ne.s32.totalorder %s334, %s335
      %p346 = scmp.eq.s32.totalorder %s38, 0
      %p347 = por %p345, %p346
      %p348 = scmp.ne.s32.totalorder %s334, %s335
      %p349 = scmp.eq.s32.totalorder %s39, 3
      %p350 = por %p348, %p349
      %p352 = scmp.ne.s32.totalorder %s335, %s351
      %p353 = scmp.eq.s32.totalorder %s39, 0
      %p354 = por %p352, %p353
      %s355 = ssub.s32 %s41, %s48
      %p356 = scmp.eq.s32.totalorder %s355, 0
      %s358 = sadd.s32 %s357, 1
      %s359 = scalar_select %p356, %s357, %s358
      %p362 = pneg %p356
      %p363 = scmp.eq.s32.totalorder %s33, 3
      %p364 = por %p362, %p363
      %p365 = scmp.ne.s32.totalorder %s357, %s360
      %p366 = scmp.eq.s32.totalorder %s33, 0
      %p367 = por %p365, %p366
      %p368 = scmp.ne.s32.totalorder %s357, %s360
      %p369 = scmp.eq.s32.totalorder %s38, 3
      %p370 = por %p368, %p369
      %p371 = scmp.ne.s32.totalorder %s360, %s361
      %p372 = scmp.eq.s32.totalorder %s38, 0
      %p373 = por %p371, %p372
      %p374 = scmp.ne.s32.totalorder %s360, %s361
      %p375 = scmp.eq.s32.totalorder %s39, 3
      %p376 = por %p374, %p375
      %p378 = scmp.ne.s32.totalorder %s361, %s377
      %p379 = scmp.eq.s32.totalorder %s39, 0
      %p380 = por %p378, %p379
      %s381 = ssub.s32 %s41, %s48
      %p382 = scmp.eq.s32.totalorder %s381, 0
      %s384 = sadd.s32 %s383, 1
      %s385 = scalar_select %p382, %s383, %s384
      %p388 = pneg %p382
      %p389 = scmp.eq.s32.totalorder %s33, 3
      %p390 = por %p388, %p389
      %p391 = scmp.ne.s32.totalorder %s383, %s386
      %p392 = scmp.eq.s32.totalorder %s33, 0
      %p393 = por %p391, %p392
      %p394 = scmp.ne.s32.totalorder %s383, %s386
      %p395 = scmp.eq.s32.totalorder %s38, 3
      %p396 = por %p394, %p395
      %p397 = scmp.ne.s32.totalorder %s386, %s387
      %p398 = scmp.eq.s32.totalorder %s38, 0
      %p399 = por %p397, %p398
      %p400 = scmp.ne.s32.totalorder %s386, %s387
      %p401 = scmp.eq.s32.totalorder %s39, 3
      %p402 = por %p400, %p401
      %p404 = scmp.ne.s32.totalorder %s387, %s403
      %p405 = scmp.eq.s32.totalorder %s39, 0
      %p406 = por %p404, %p405
      %s407 = ssub.s32 %s41, %s48
      %p408 = scmp.eq.s32.totalorder %s407, 0
      %s410 = sadd.s32 %s409, 1
      %s411 = scalar_select %p408, %s409, %s410
      %p414 = pneg %p408
      %p415 = scmp.eq.s32.totalorder %s33, 3
      %p416 = por %p414, %p415
      %p417 = scmp.ne.s32.totalorder %s409, %s412
      %p418 = scmp.eq.s32.totalorder %s33, 0
      %p419 = por %p417, %p418
      %p420 = scmp.ne.s32.totalorder %s409, %s412
      %p421 = scmp.eq.s32.totalorder %s38, 3
      %p422 = por %p420, %p421
      %p423 = scmp.ne.s32.totalorder %s412, %s413
      %p424 = scmp.eq.s32.totalorder %s38, 0
      %p425 = por %p423, %p424
      %p426 = scmp.ne.s32.totalorder %s412, %s413
      %p427 = scmp.eq.s32.totalorder %s39, 3
      %p428 = por %p426, %p427
      %p430 = scmp.ne.s32.totalorder %s413, %s429
      %p431 = scmp.eq.s32.totalorder %s39, 0
      %p432 = por %p430, %p431
      %s433 = ssub.s32 %s41, %s48
      %p434 = scmp.eq.s32.totalorder %s433, 0
      %s436 = sadd.s32 %s435, 1
      %s437 = scalar_select %p434, %s435, %s436
      %p440 = pneg %p434
      %p441 = scmp.eq.s32.totalorder %s33, 3
      %p442 = por %p440, %p441
      %p443 = scmp.ne.s32.totalorder %s435, %s438
      %p444 = scmp.eq.s32.totalorder %s33, 0
      %p445 = por %p443, %p444
      %p446 = scmp.ne.s32.totalorder %s435, %s438
      %p447 = scmp.eq.s32.totalorder %s38, 3
      %p448 = por %p446, %p447
      %p449 = scmp.ne.s32.totalorder %s438, %s439
      %p450 = scmp.eq.s32.totalorder %s38, 0
      %p451 = por %p449, %p450
      %p452 = scmp.ne.s32.totalorder %s438, %s439
      %p453 = scmp.eq.s32.totalorder %s39, 3
      %p454 = por %p452, %p453
      %p456 = scmp.ne.s32.totalorder %s439, %s455
      %p457 = scmp.eq.s32.totalorder %s39, 0
      %p458 = por %p456, %p457
      %s460 = sadd.s32 %s459, 1
      %p463 = scmp.eq.s32.totalorder %s33, 3
      %p464 = scmp.ne.s32.totalorder %s459, %s461
      %p465 = scmp.eq.s32.totalorder %s33, 0
      %p466 = por %p464, %p465
      %p467 = scmp.ne.s32.totalorder %s459, %s461
      %p468 = scmp.eq.s32.totalorder %s38, 3
      %p469 = por %p467, %p468
      %p470 = scmp.ne.s32.totalorder %s461, %s462
      %p471 = scmp.eq.s32.totalorder %s38, 0
      %p472 = por %p470, %p471
      %p473 = scmp.ne.s32.totalorder %s461, %s462
      %p474 = scmp.eq.s32.totalorder %s39, 3
      %p475 = por %p473, %p474
      %p477 = scmp.ne.s32.totalorder %s462, %s476
      %p478 = scmp.eq.s32.totalorder %s39, 0
      %p479 = por %p477, %p478
      %s481 = sadd.s32 %s480, 1
      %p484 = scmp.eq.s32.totalorder %s33, 3
      %p485 = scmp.ne.s32.totalorder %s480, %s482
      %p486 = scmp.eq.s32.totalorder %s33, 0
      %p487 = por %p485, %p486
      %p488 = scmp.ne.s32.totalorder %s480, %s482
      %p489 = scmp.eq.s32.totalorder %s38, 3
      %p490 = por %p488, %p489
      %p491 = scmp.ne.s32.totalorder %s482, %s483
      %p492 = scmp.eq.s32.totalorder %s38, 0
      %p493 = por %p491, %p492
      %p494 = scmp.ne.s32.totalorder %s482, %s483
      %p495 = scmp.eq.s32.totalorder %s39, 3
      %p496 = por %p494, %p495
      %p498 = scmp.ne.s32.totalorder %s483, %s497
      %p499 = scmp.eq.s32.totalorder %s39, 0
      %p500 = por %p498, %p499
      %s502 = sadd.s32 %s501, 1
      %p505 = scmp.eq.s32.totalorder %s33, 3
      %p506 = scmp.ne.s32.totalorder %s501, %s503
      %p507 = scmp.eq.s32.totalorder %s33, 0
      %p508 = por %p506, %p507
      %p509 = scmp.ne.s32.totalorder %s501, %s503
      %p510 = scmp.eq.s32.totalorder %s38, 3
      %p511 = por %p509, %p510
      %p512 = scmp.ne.s32.totalorder %s503, %s504
      %p513 = scmp.eq.s32.totalorder %s38, 0
      %p514 = por %p512, %p513
      %p515 = scmp.ne.s32.totalorder %s503, %s504
      %p516 = scmp.eq.s32.totalorder %s39, 3
      %p517 = por %p515, %p516
      %p519 = scmp.ne.s32.totalorder %s504, %s518
      %p520 = scmp.eq.s32.totalorder %s39, 0
      %p521 = por %p519, %p520
      %s523 = sadd.s32 %s522, 1
      %p526 = scmp.eq.s32.totalorder %s33, 3
      %p527 = scmp.ne.s32.totalorder %s522, %s524
      %p528 = scmp.eq.s32.totalorder %s33, 0
      %p529 = por %p527, %p528
      %p530 = scmp.ne.s32.totalorder %s522, %s524
      %p531 = scmp.eq.s32.totalorder %s38, 3
      %p532 = por %p530, %p531
      %p533 = scmp.ne.s32.totalorder %s524, %s525
      %p534 = scmp.eq.s32.totalorder %s38, 0
      %p535 = por %p533, %p534
      %p536 = scmp.ne.s32.totalorder %s524, %s525
      %p537 = scmp.eq.s32.totalorder %s39, 3
      %p538 = por %p536, %p537
      %p540 = scmp.ne.s32.totalorder %s525, %s539
      %p541 = scmp.eq.s32.totalorder %s39, 0
      %p542 = por %p540, %p541
      %s543 = ssub.s32 %s40, %s52
      %p544 = scmp.eq.s32.totalorder %s543, 0
      %s546 = sadd.s32 %s545, 1
      %s547 = scalar_select %p544, %s545, %s546
      %p550 = pneg %p544
      %p551 = scmp.eq.s32.totalorder %s33, 3
      %p552 = por %p550, %p551
      %p553 = scmp.ne.s32.totalorder %s545, %s548
      %p554 = scmp.eq.s32.totalorder %s33, 0
      %p555 = por %p553, %p554
      %p556 = scmp.ne.s32.totalorder %s545, %s548
      %p557 = scmp.eq.s32.totalorder %s38, 3
      %p558 = por %p556, %p557
      %p559 = scmp.ne.s32.totalorder %s548, %s549
      %p560 = scmp.eq.s32.totalorder %s38, 0
      %p561 = por %p559, %p560
      %p562 = scmp.ne.s32.totalorder %s548, %s549
      %p563 = scmp.eq.s32.totalorder %s39, 3
      %p564 = por %p562, %p563
      %p566 = scmp.ne.s32.totalorder %s549, %s565
      %p567 = scmp.eq.s32.totalorder %s39, 0
      %p568 = por %p566, %p567
      %s569 = ssub.s32 %s40, %s52
      %p570 = scmp.eq.s32.totalorder %s569, 0
      %s572 = sadd.s32 %s571, 1
      %s573 = scalar_select %p570, %s571, %s572
      %p576 = pneg %p570
      %p577 = scmp.eq.s32.totalorder %s33, 3
      %p578 = por %p576, %p577
      %p579 = scmp.ne.s32.totalorder %s571, %s574
      %p580 = scmp.eq.s32.totalorder %s33, 0
      %p581 = por %p579, %p580
      %p582 = scmp.ne.s32.totalorder %s571, %s574
      %p583 = scmp.eq.s32.totalorder %s38, 3
      %p584 = por %p582, %p583
      %p585 = scmp.ne.s32.totalorder %s574, %s575
      %p586 = scmp.eq.s32.totalorder %s38, 0
      %p587 = por %p585, %p586
      %p588 = scmp.ne.s32.totalorder %s574, %s575
      %p589 = scmp.eq.s32.totalorder %s39, 3
      %p590 = por %p588, %p589
      %p592 = scmp.ne.s32.totalorder %s575, %s591
      %p593 = scmp.eq.s32.totalorder %s39, 0
      %p594 = por %p592, %p593
      %p595 = scmp.le.s32.totalorder 1, %s33
      %p596 = scmp.lt.s32.totalorder %s33, 5
      %p597 = pnand %p595, %p596
      %p598 = pneg %p597
      // Predicated region
      $region9: #{roberta_pooled_output.1} parent=5 // pred_check
        _
      $region10: #{roberta_pooled_output.1} parent=5 // pred_check_branch
        %600 = sbr.rel (%p597) target = $region12
      $region11: #{roberta_pooled_output.1} parent=5 // pred_region
        %s601 = ssub.s32 %s33, 1
        // Predicated region
        $region13: #{roberta_pooled_output.1} parent=11 // pred_check
          %p602 = pneg %p118
        $region14: #{roberta_pooled_output.1} parent=11 // pred_check_branch
          %604 = sbr.rel (%p602) target = $region16
        $region15: #{roberta_pooled_output.1} parent=11 // pred_region
          _
        $region16: #{roberta_pooled_output.1} parent=11 // pred_fallthru
          _
        // Predicated region
        $region17: #{roberta_pooled_output.1} parent=11 // pred_check
          %p605 = pneg %p139
        $region18: #{roberta_pooled_output.1} parent=11 // pred_check_branch
          %607 = sbr.rel (%p605) target = $region20
        $region19: #{roberta_pooled_output.1} parent=11 // pred_region
          _
        $region20: #{roberta_pooled_output.1} parent=11 // pred_fallthru
          _
        // Predicated region
        $region21: #{roberta_pooled_output.1} parent=11 // pred_check
          %p608 = pneg %p472
        $region22: #{roberta_pooled_output.1} parent=11 // pred_check_branch
          %610 = sbr.rel (%p608) target = $region24
        $region23: #{roberta_pooled_output.1} parent=11 // pred_region
          _
        $region24: #{roberta_pooled_output.1} parent=11 // pred_fallthru
          _
        // Predicated region
        $region25: #{roberta_pooled_output.1} parent=11 // pred_check
          %p611 = pneg %p493
        $region26: #{roberta_pooled_output.1} parent=11 // pred_check_branch
          %613 = sbr.rel (%p611) target = $region28
        $region27: #{roberta_pooled_output.1} parent=11 // pred_region
          _
        $region28: #{roberta_pooled_output.1} parent=11 // pred_fallthru
          _
        // Predicated region
        $region29: #{roberta_pooled_output.1} parent=11 // pred_check
          %p614 = pneg %p514
        $region30: #{roberta_pooled_output.1} parent=11 // pred_check_branch
          %616 = sbr.rel (%p614) target = $region32
        $region31: #{roberta_pooled_output.1} parent=11 // pred_region
          _
        $region32: #{roberta_pooled_output.1} parent=11 // pred_fallthru
          _
        // Predicated region
        $region33: #{roberta_pooled_output.1} parent=11 // pred_check
          %p617 = pneg %p535
        $region34: #{roberta_pooled_output.1} parent=11 // pred_check_branch
          %619 = sbr.rel (%p617) target = $region36
        $region35: #{roberta_pooled_output.1} parent=11 // pred_region
          _
        $region36: #{roberta_pooled_output.1} parent=11 // pred_fallthru
          _
      $region12: #{roberta_pooled_output.1} parent=5 // pred_fallthru
        _
      %p620 = scmp.lt.s32.totalorder %s33, 4
      // Predicated region
      $region37: #{roberta_pooled_output.1} parent=5 // pred_check
        %p621 = pneg %p620
      $region38: #{roberta_pooled_output.1} parent=5 // pred_check_branch
        %623 = sbr.rel (%p621) target = $region40
      $region39: #{roberta_pooled_output.1} parent=5 // pred_region
        // Predicated region
        $region41: #{roberta_pooled_output.1} parent=39 // pred_check
          %p624 = pneg %p65
        $region42: #{roberta_pooled_output.1} parent=39 // pred_check_branch
          %626 = sbr.rel (%p624) target = $region44
        $region43: #{roberta_pooled_output.1} parent=39 // pred_region
          %p627 = scmp.lt.s32.totalorder %s40, 1
          %s628 = scalar_select %p627, %s40, 1
          %s629 = smul.addr %s628, 8
          %s630 = scalar_lea.vmem %s0, %s629
        $region44: #{roberta_pooled_output.1} parent=39 // pred_fallthru
          _
        // Predicated region
        $region45: #{roberta_pooled_output.1} parent=39 // pred_check
          %p631 = pneg %p91
        $region46: #{roberta_pooled_output.1} parent=39 // pred_check_branch
          %633 = sbr.rel (%p631) target = $region48
        $region47: #{roberta_pooled_output.1} parent=39 // pred_region
          %p634 = scmp.lt.s32.totalorder %s40, 1
          %s635 = scalar_select %p634, %s40, 1
          %s636 = scalar_lea.vmem %s1, %s635
        $region48: #{roberta_pooled_output.1} parent=39 // pred_fallthru
          _
        // Predicated region
        $region49: #{roberta_pooled_output.1} parent=39 // pred_check
          %p637 = pneg %p159
        $region50: #{roberta_pooled_output.1} parent=39 // pred_check_branch
          %639 = sbr.rel (%p637) target = $region52
        $region51: #{roberta_pooled_output.1} parent=39 // pred_region
          %p640 = scmp.lt.s32.totalorder %s41, 1
          %s641 = scalar_select %p640, %s41, 1
          %s642 = smul.addr %s641, 4
          %s643 = smul.addr %s642, 4
          %s644 = scalar_lea.vmem %s4, %s643
        $region52: #{roberta_pooled_output.1} parent=39 // pred_fallthru
          _
        // Predicated region
        $region53: #{roberta_pooled_output.1} parent=39 // pred_check
          %p645 = pneg %p185
        $region54: #{roberta_pooled_output.1} parent=39 // pred_check_branch
          %647 = sbr.rel (%p645) target = $region56
        $region55: #{roberta_pooled_output.1} parent=39 // pred_region
          %p648 = scmp.lt.s32.totalorder %s41, 1
          %s649 = scalar_select %p648, %s41, 1
          %s650 = scalar_lea.vmem %s5, %s649
        $region56: #{roberta_pooled_output.1} parent=39 // pred_fallthru
          _
        // Predicated region
        $region57: #{roberta_pooled_output.1} parent=39 // pred_check
          %p651 = pneg %p211
        $region58: #{roberta_pooled_output.1} parent=39 // pred_check_branch
          %653 = sbr.rel (%p651) target = $region60
        $region59: #{roberta_pooled_output.1} parent=39 // pred_region
          %p654 = scmp.lt.s32.totalorder %s41, 1
          %s655 = scalar_select %p654, %s41, 1
          %s656 = smul.addr %s655, 4
          %s657 = smul.addr %s656, 4
          %s658 = scalar_lea.vmem %s6, %s657
        $region60: #{roberta_pooled_output.1} parent=39 // pred_fallthru
          _
        // Predicated region
        $region61: #{roberta_pooled_output.1} parent=39 // pred_check
          %p659 = pneg %p237
        $region62: #{roberta_pooled_output.1} parent=39 // pred_check_branch
          %661 = sbr.rel (%p659) target = $region64
        $region63: #{roberta_pooled_output.1} parent=39 // pred_region
          %p662 = scmp.lt.s32.totalorder %s41, 1
          %s663 = scalar_select %p662, %s41, 1
          %s664 = scalar_lea.vmem %s7, %s663
        $region64: #{roberta_pooled_output.1} parent=39 // pred_fallthru
          _
        // Predicated region
        $region65: #{roberta_pooled_output.1} parent=39 // pred_check
          %p665 = pneg %p263
        $region66: #{roberta_pooled_output.1} parent=39 // pred_check_branch
          %667 = sbr.rel (%p665) target = $region68
        $region67: #{roberta_pooled_output.1} parent=39 // pred_region
          %p668 = scmp.lt.s32.totalorder %s41, 1
          %s669 = scalar_select %p668, %s41, 1
          %s670 = scalar_lea.vmem %s8, %s669
        $region68: #{roberta_pooled_output.1} parent=39 // pred_fallthru
          _
        // Predicated region
        $region69: #{roberta_pooled_output.1} parent=39 // pred_check
          %p671 = pneg %p289
        $region70: #{roberta_pooled_output.1} parent=39 // pred_check_branch
          %673 = sbr.rel (%p671) target = $region72
        $region71: #{roberta_pooled_output.1} parent=39 // pred_region
          %p674 = scmp.lt.s32.totalorder %s41, 1
          %s675 = scalar_select %p674, %s41, 1
          %s676 = scalar_lea.vmem %s9, %s675
        $region72: #{roberta_pooled_output.1} parent=39 // pred_fallthru
          _
        // Predicated region
        $region73: #{roberta_pooled_output.1} parent=39 // pred_check
          %p677 = pneg %p315
        $region74: #{roberta_pooled_output.1} parent=39 // pred_check_branch
          %679 = sbr.rel (%p677) target = $region76
        $region75: #{roberta_pooled_output.1} parent=39 // pred_region
          %p680 = scmp.lt.s32.totalorder %s41, 1
          %s681 = scalar_select %p680, %s41, 1
          %s682 = smul.addr %s681, 4
          %s683 = smul.addr %s682, 4
          %s684 = scalar_lea.vmem %s10, %s683
        $region76: #{roberta_pooled_output.1} parent=39 // pred_fallthru
          _
        // Predicated region
        $region77: #{roberta_pooled_output.1} parent=39 // pred_check
          %p685 = pneg %p341
        $region78: #{roberta_pooled_output.1} parent=39 // pred_check_branch
          %687 = sbr.rel (%p685) target = $region80
        $region79: #{roberta_pooled_output.1} parent=39 // pred_region
          %p688 = scmp.lt.s32.totalorder %s41, 1
          %s689 = scalar_select %p688, %s41, 1
          %s690 = scalar_lea.vmem %s11, %s689
        $region80: #{roberta_pooled_output.1} parent=39 // pred_fallthru
          _
        // Predicated region
        $region81: #{roberta_pooled_output.1} parent=39 // pred_check
          %p691 = pneg %p367
        $region82: #{roberta_pooled_output.1} parent=39 // pred_check_branch
          %693 = sbr.rel (%p691) target = $region84
        $region83: #{roberta_pooled_output.1} parent=39 // pred_region
          %p694 = scmp.lt.s32.totalorder %s41, 1
          %s695 = scalar_select %p694, %s41, 1
          %s696 = smul.addr %s695, 8
          %s697 = smul.addr %s696, 4
          %s698 = scalar_lea.vmem %s12, %s697
        $region84: #{roberta_pooled_output.1} parent=39 // pred_fallthru
          _
        // Predicated region
        $region85: #{roberta_pooled_output.1} parent=39 // pred_check
          %p699 = pneg %p393
        $region86: #{roberta_pooled_output.1} parent=39 // pred_check_branch
          %701 = sbr.rel (%p699) target = $region88
        $region87: #{roberta_pooled_output.1} parent=39 // pred_region
          %p702 = scmp.lt.s32.totalorder %s41, 1
          %s703 = scalar_select %p702, %s41, 1
          %s704 = scalar_lea.vmem %s13, %s703
        $region88: #{roberta_pooled_output.1} parent=39 // pred_fallthru
          _
        // Predicated region
        $region89: #{roberta_pooled_output.1} parent=39 // pred_check
          %p705 = pneg %p419
        $region90: #{roberta_pooled_output.1} parent=39 // pred_check_branch
          %707 = sbr.rel (%p705) target = $region92
        $region91: #{roberta_pooled_output.1} parent=39 // pred_region
          %p708 = scmp.lt.s32.totalorder %s41, 1
          %s709 = scalar_select %p708, %s41, 1
          %s710 = scalar_lea.vmem %s14, %s709
        $region92: #{roberta_pooled_output.1} parent=39 // pred_fallthru
          _
        // Predicated region
        $region93: #{roberta_pooled_output.1} parent=39 // pred_check
          %p711 = pneg %p445
        $region94: #{roberta_pooled_output.1} parent=39 // pred_check_branch
          %713 = sbr.rel (%p711) target = $region96
        $region95: #{roberta_pooled_output.1} parent=39 // pred_region
          %p714 = scmp.lt.s32.totalorder %s41, 1
          %s715 = scalar_select %p714, %s41, 1
          %s716 = scalar_lea.vmem %s15, %s715
        $region96: #{roberta_pooled_output.1} parent=39 // pred_fallthru
          _
      $region40: #{roberta_pooled_output.1} parent=5 // pred_fallthru
        _
      %p717 = scmp.le.s32.totalorder 1, %s33
      %p718 = scmp.lt.s32.totalorder %s33, 5
      %p719 = pnand %p717, %p718
      %p720 = pneg %p719
      // Predicated region
      $region97: #{roberta_pooled_output.1} parent=5 // pred_check
        _
      $region98: #{roberta_pooled_output.1} parent=5 // pred_check_branch
        %722 = sbr.rel (%p719) target = $region100
      $region99: #{roberta_pooled_output.1} parent=5 // pred_region
        %s723 = ssub.s32 %s33, 1
        %p724 = scmp.lt.s32.totalorder %s42, 1
        %s725 = scalar_select %p724, %s42, 1
        %s726 = smul.addr %s725, 8
        %s727 = scalar_lea.vmem %s0, %s726
        %p728 = pneg %p71
        %p729 = pneg %p68
        %p730 = scmp.lt.s32.totalorder %s42, 1
        %s731 = scalar_select %p730, %s42, 1
        %s732 = scalar_lea.vmem %s1, %s731
        %p733 = pneg %p97
        %p734 = pneg %p94
        %p735 = pneg %p118
        %p736 = pneg %p115
        %p737 = pneg %p139
        %p738 = pneg %p136
        %p739 = scmp.lt.s32.totalorder %s43, 1
        %s740 = scalar_select %p739, %s43, 1
        %s741 = smul.addr %s740, 4
        %s742 = smul.addr %s741, 4
        %s743 = scalar_lea.vmem %s4, %s742
        %p744 = pneg %p165
        %p745 = pneg %p162
        %p746 = scmp.lt.s32.totalorder %s43, 1
        %s747 = scalar_select %p746, %s43, 1
        %s748 = scalar_lea.vmem %s5, %s747
        %p749 = pneg %p191
        %p750 = pneg %p188
        %p751 = scmp.lt.s32.totalorder %s43, 1
        %s752 = scalar_select %p751, %s43, 1
        %s753 = smul.addr %s752, 4
        %s754 = smul.addr %s753, 4
        %s755 = scalar_lea.vmem %s6, %s754
        %p756 = pneg %p217
        %p757 = pneg %p214
        %p758 = scmp.lt.s32.totalorder %s43, 1
        %s759 = scalar_select %p758, %s43, 1
        %s760 = scalar_lea.vmem %s7, %s759
        %p761 = pneg %p243
        %p762 = pneg %p240
        %p763 = scmp.lt.s32.totalorder %s43, 1
        %s764 = scalar_select %p763, %s43, 1
        %s765 = scalar_lea.vmem %s8, %s764
        %p766 = pneg %p269
        %p767 = pneg %p266
        %p768 = scmp.lt.s32.totalorder %s43, 1
        %s769 = scalar_select %p768, %s43, 1
        %s770 = scalar_lea.vmem %s9, %s769
        %p771 = pneg %p295
        %p772 = pneg %p292
        %p773 = scmp.lt.s32.totalorder %s43, 1
        %s774 = scalar_select %p773, %s43, 1
        %s775 = smul.addr %s774, 4
        %s776 = smul.addr %s775, 4
        %s777 = scalar_lea.vmem %s10, %s776
        %p778 = pneg %p321
        %p779 = pneg %p318
        %p780 = scmp.lt.s32.totalorder %s43, 1
        %s781 = scalar_select %p780, %s43, 1
        %s782 = scalar_lea.vmem %s11, %s781
        %p783 = pneg %p347
        %p784 = pneg %p344
        %p785 = scmp.lt.s32.totalorder %s43, 1
        %s786 = scalar_select %p785, %s43, 1
        %s787 = smul.addr %s786, 8
        %s788 = smul.addr %s787, 4
        %s789 = scalar_lea.vmem %s12, %s788
        %p790 = pneg %p373
        %p791 = pneg %p370
        %p792 = scmp.lt.s32.totalorder %s43, 1
        %s793 = scalar_select %p792, %s43, 1
        %s794 = scalar_lea.vmem %s13, %s793
        %p795 = pneg %p399
        %p796 = pneg %p396
        %p797 = scmp.lt.s32.totalorder %s43, 1
        %s798 = scalar_select %p797, %s43, 1
        %s799 = scalar_lea.vmem %s14, %s798
        %p800 = pneg %p425
        %p801 = pneg %p422
        %p802 = scmp.lt.s32.totalorder %s43, 1
        %s803 = scalar_select %p802, %s43, 1
        %s804 = scalar_lea.vmem %s15, %s803
        %p805 = pneg %p451
        %p806 = pneg %p448
        %p807 = pneg %p472
        %p808 = pneg %p469
        %p809 = pneg %p493
        %p810 = pneg %p490
        %p811 = pneg %p514
        %p812 = pneg %p511
        %p813 = pneg %p535
        %p814 = pneg %p532
        %p815 = pneg %p561
        %p816 = pneg %p558
        %s817 = sand.u32 %s548, 1
        %s818 = scalar_lea.sflag [#allocation5], %s817
        %s819 = sand.u32 %s548, 1
        %s820 = scalar_lea.vmem [#allocation4], %s819
        %p821 = pneg %p587
        %p822 = pneg %p584
        %p823 = scmp.lt.s32.totalorder %s42, 1
        %s824 = scalar_select %p823, %s42, 1
        %s825 = scalar_lea.vmem %s21, %s824
        %p826 = scmp.lt.s32.totalorder %s42, 1
        %s827 = scalar_select %p826, %s42, 1
        %s828 = smul.addr %s827, 8
        %s829 = scalar_lea.vmem %s0, %s828
        %p830 = scmp.lt.s32.totalorder %s42, 1
        %s831 = scalar_select %p830, %s42, 1
        %s832 = scalar_lea.vmem %s1, %s831
        %p833 = scmp.lt.s32.totalorder %s43, 1
        %s834 = scalar_select %p833, %s43, 1
        %s835 = smul.addr %s834, 4
        %s836 = smul.addr %s835, 4
        %s837 = scalar_lea.vmem %s4, %s836
        %p838 = scmp.lt.s32.totalorder %s43, 1
        %s839 = scalar_select %p838, %s43, 1
        %s840 = scalar_lea.vmem %s5, %s839
        %p841 = scmp.lt.s32.totalorder %s43, 1
        %s842 = scalar_select %p841, %s43, 1
        %s843 = smul.addr %s842, 4
        %s844 = smul.addr %s843, 4
        %s845 = scalar_lea.vmem %s6, %s844
        %p846 = scmp.lt.s32.totalorder %s43, 1
        %s847 = scalar_select %p846, %s43, 1
        %s848 = scalar_lea.vmem %s7, %s847
        %p849 = scmp.lt.s32.totalorder %s43, 1
        %s850 = scalar_select %p849, %s43, 1
        %s851 = scalar_lea.vmem %s8, %s850
        %p852 = scmp.lt.s32.totalorder %s43, 1
        %s853 = scalar_select %p852, %s43, 1
        %s854 = scalar_lea.vmem %s9, %s853
        %p855 = scmp.lt.s32.totalorder %s43, 1
        %s856 = scalar_select %p855, %s43, 1
        %s857 = smul.addr %s856, 4
        %s858 = smul.addr %s857, 4
        %s859 = scalar_lea.vmem %s10, %s858
        %p860 = scmp.lt.s32.totalorder %s43, 1
        %s861 = scalar_select %p860, %s43, 1
        %s862 = scalar_lea.vmem %s11, %s861
        %p863 = scmp.lt.s32.totalorder %s43, 1
        %s864 = scalar_select %p863, %s43, 1
        %s865 = smul.addr %s864, 8
        %s866 = smul.addr %s865, 4
        %s867 = scalar_lea.vmem %s12, %s866
        %p868 = scmp.lt.s32.totalorder %s43, 1
        %s869 = scalar_select %p868, %s43, 1
        %s870 = scalar_lea.vmem %s13, %s869
        %p871 = scmp.lt.s32.totalorder %s43, 1
        %s872 = scalar_select %p871, %s43, 1
        %s873 = scalar_lea.vmem %s14, %s872
        %p874 = scmp.lt.s32.totalorder %s43, 1
        %s875 = scalar_select %p874, %s43, 1
        %s876 = scalar_lea.vmem %s15, %s875
        %p877 = scmp.lt.s32.totalorder %s42, 1
        %s878 = scalar_select %p877, %s42, 1
        %s879 = scalar_lea.vmem %s21, %s878
        %p881 = scmp.eq.s32.totalorder %s43, 0
        // Predicated region
        $region101: #{roberta_pooled_output.1} parent=99 // pred_check
          %p882 = pneg %p881
        $region102: #{roberta_pooled_output.1} parent=99 // pred_check_branch
          %884 = sbr.rel (%p882) target = $region104
        $region103: #{roberta_pooled_output.1} parent=99 // pred_region
          %v885 = vld [vmem:[%s829] sm:$0xff]
          %v886 = vld [vmem:[%s2] sm:$0x1]
          %v887 = vld [vmem:[%s3] sm:$0x1]
          %vm888 = vcmask 261120
          %v889 = vsel %vm888, %v885, 0.0
          %890 = vadd.xlane.f32.xlu0 %v889
          %v891 = vpop.xlane.xlu0 %890
          %v892 = vrcp.pop 32.0
          %v893 = vmul.f32 %v891, %v892
          %v894 = vsub.f32 %v885, %v893
          %v895 = vmul.f32 %v894, %v894
          %v896 = vsel %vm888, %v895, 0.0
          %897 = vadd.xlane.f32.xlu0 %v896
          %v898 = vpop.xlane.xlu0 %897
          %v899 = vmul.f32 %v898, %v892
          %v900 = vadd.f32 %v899, 1e-05
          %v901 = vrsqrt.pop %v900
          %v902 = vmul.f32 %v894, %v901
          %v904 = vlaneseq
          %v905 = vshrl.u32 %v904, 7
          %v906 = vsub.s32 0, %v905
          %v907 = vrot.slane %v886, %v906
          %v909 = vmul.f32 %v902, %v907
          %v911 = vlaneseq
          %v912 = vshrl.u32 %v911, 7
          %v913 = vsub.s32 0, %v912
          %v914 = vrot.slane %v887, %v913
          %v916 = vadd.f32 %v909, %v914
          %917 = vst.msk [vmem:[#allocation2] sm:$0xff] %vm888, %v916
        $region104: #{roberta_pooled_output.1} parent=99 // pred_fallthru
          _
        %v918 = vld [vmem:[#allocation2] sm:$0xff]
        %v919 = vpack.c.bf16 %v918, %v918
        %v920 = vld [vmem:[%s837] sm:$0xf]
        %v921 = vld [vmem:[%s837 + $0x4] sm:$0xf]
        %v922 = vld [vmem:[%s837 + $0x8] sm:$0xf]
        %v923 = vld [vmem:[%s837 + $0xc] sm:$0xf]
        %v924 = vld [vmem:[%s840] sm:$0x1]
        %v926 = vlaneseq
        %v927 = vshrl.u32 %v926, 7
        %v928 = vsub.s32 0, %v927
        %v929 = vrot.slane %v924, %v928
        %v935 = vunpack.c.l.b16 %v920
        %v936 = vunpack.c.l.b16 %v921
        %v937 = vunpack.c.l.b16 %v922
        %v938 = vunpack.c.l.b16 %v923
        %v939 = vpack.c.b16 %v936, %v935
        %v940 = vpack.c.b16 %v938, %v937
        %vm943 = vcmask 261120
        %v945 = vsel %vm943, %v919, 0
        %947 = vmatprep.subr.bf16.mxu0 0
        %948 = vmatpush1.bf16.msra.mxu0 0
        %949 = vmatprep.subr.bf16.mxu0 0
        %950 = vmatpush1.bf16.msra.mxu0 0
        %951 = vmatprep.subr.bf16.mxu0 0
        %952 = vmatpush1.bf16.msra.mxu0 0
        %953 = vmatprep.subr.bf16.mxu0 0
        %954 = vmatpush1.bf16.msra.mxu0 0
        %955 = vmatprep.subr.bf16.mxu0 0
        %956 = vmatpush1.bf16.msra.mxu0 0
        %957 = vmatprep.subr.bf16.mxu0 0
        %958 = vmatpush1.bf16.msra.mxu0 0
        %959 = vmatprep.subr.bf16.mxu0 0
        %960 = vmatpush1.bf16.msra.mxu0 %v940
        %961 = vmatprep.subr.bf16.mxu0 0
        %962 = vmatpush1.bf16.msra.mxu0 %v939
        %963 = vmatprep.subr.bf16.mxu0 0
        %964 = vmatpush2.bf16.msra.mxu0 0
        %965 = vmatprep.subr.bf16.mxu0 0
        %966 = vmatpush2.bf16.msra.mxu0 0
        %967 = vmatprep.subr.bf16.mxu0 0
        %968 = vmatpush2.bf16.msra.mxu0 0
        %969 = vmatprep.subr.bf16.mxu0 0
        %970 = vmatpush2.bf16.msra.mxu0 0
        %971 = vmatprep.subr.bf16.mxu0 0
        %972 = vmatpush2.bf16.msra.mxu0 0
        %973 = vmatprep.subr.bf16.mxu0 0
        %974 = vmatpush2.bf16.msra.mxu0 0
        %975 = vmatprep.subr.bf16.mxu0 0
        %976 = vmatpush2.bf16.msra.mxu0 0
        %977 = vmatprep.subr.bf16.mxu0 0
        %978 = vmatpush2.bf16.msra.mxu0 0
        %979 = vmatprep.mubr.bf16.mxu0 0
        %980 = vmatmul.mubr.bf16.gmra.mxu0 %v945
        %v981 = vpop.f32.mrf.mxu0
        %v982 = vadd.f32 %v929, %v981
        %v983 = vpop.f32.mrf.mxu0
        %v984 = vpop.f32.mrf.mxu0
        %v985 = vpop.f32.mrf.mxu0
        %986 = vdwg.mxu0
        %988 = vrot.lane.b32.xlu0 %v982, 112
        %v989 = vpop.permute.xlu0 %988
        %991 = vrot.lane.b32.xlu0 %v982, 96
        %v992 = vpop.permute.xlu0 %991
        %994 = vrot.lane.b32.xlu0 %v982, 80
        %v995 = vpop.permute.xlu0 %994
        %997 = vrot.lane.b32.xlu0 %v982, 64
        %v998 = vpop.permute.xlu0 %997
        %1000 = vrot.lane.b32.xlu0 %v982, 48
        %v1001 = vpop.permute.xlu0 %1000
        %v1003 = vcombine.low %v982, %v992
        %v1004 = vcombine.high %v982, %v992
        %v1006 = vunpack.c.l.s4 1983009808
        %v1007 = vunpack.c.0.s8 %v1006
        %v1008 = vlaneseq
        %v1009 = vshrl.u32 %v1008, 7
        %v1010 = vsub.s32 %v1007, %v1009
        %v1011 = vrot.slane %v1003, %v1010
        %v1013 = vunpack.c.l.s4 1983009808
        %v1014 = vunpack.c.0.s8 %v1013
        %v1015 = vlaneseq
        %v1016 = vshrl.u32 %v1015, 7
        %v1017 = vsub.s32 %v1014, %v1016
        %v1018 = vrot.slane %v1004, %v1017
        %v1019 = vcombine.low %v989, %v995
        %v1020 = vcombine.high %v989, %v995
        %v1022 = vunpack.c.l.s4 1983009808
        %v1023 = vunpack.c.0.s8 %v1022
        %v1024 = vlaneseq
        %v1025 = vshrl.u32 %v1024, 7
        %v1026 = vsub.s32 %v1023, %v1025
        %v1027 = vrot.slane %v1019, %v1026
        %v1029 = vunpack.c.l.s4 1983009808
        %v1030 = vunpack.c.0.s8 %v1029
        %v1031 = vlaneseq
        %v1032 = vshrl.u32 %v1031, 7
        %v1033 = vsub.s32 %v1030, %v1032
        %v1034 = vrot.slane %v1020, %v1033
        %v1035 = vcombine.high %v998, 0.0
        %v1037 = vunpack.c.l.s4 1983009808
        %v1038 = vunpack.c.0.s8 %v1037
        %v1039 = vlaneseq
        %v1040 = vshrl.u32 %v1039, 7
        %v1041 = vsub.s32 %v1038, %v1040
        %v1042 = vrot.slane %v998, %v1041
        %v1044 = vunpack.c.l.s4 1983009808
        %v1045 = vunpack.c.0.s8 %v1044
        %v1046 = vlaneseq
        %v1047 = vshrl.u32 %v1046, 7
        %v1048 = vsub.s32 %v1045, %v1047
        %v1049 = vrot.slane %v1035, %v1048
        %v1050 = vcombine.high %v1001, 0.0
        %v1052 = vunpack.c.l.s4 1983009808
        %v1053 = vunpack.c.0.s8 %v1052
        %v1054 = vlaneseq
        %v1055 = vshrl.u32 %v1054, 7
        %v1056 = vsub.s32 %v1053, %v1055
        %v1057 = vrot.slane %v1001, %v1056
        %v1059 = vunpack.c.l.s4 1983009808
        %v1060 = vunpack.c.0.s8 %v1059
        %v1061 = vlaneseq
        %v1062 = vshrl.u32 %v1061, 7
        %v1063 = vsub.s32 %v1060, %v1062
        %v1064 = vrot.slane %v1050, %v1063
        %v1065 = vcombine.low %v1011, %v1027
        %v1066 = vcombine.high %v1011, %v1027
        %v1068 = vunpack.c.l.s4 1934713408
        %v1069 = vunpack.c.0.s8 %v1068
        %v1070 = vlaneseq
        %v1071 = vshrl.u32 %v1070, 7
        %v1072 = vsub.s32 %v1069, %v1071
        %v1073 = vrot.slane %v1065, %v1072
        %v1075 = vunpack.c.l.s4 1934713408
        %v1076 = vunpack.c.0.s8 %v1075
        %v1077 = vlaneseq
        %v1078 = vshrl.u32 %v1077, 7
        %v1079 = vsub.s32 %v1076, %v1078
        %v1080 = vrot.slane %v1066, %v1079
        %v1081 = vcombine.low %v1018, %v1034
        %v1082 = vcombine.high %v1018, %v1034
        %v1084 = vunpack.c.l.s4 1934713408
        %v1085 = vunpack.c.0.s8 %v1084
        %v1086 = vlaneseq
        %v1087 = vshrl.u32 %v1086, 7
        %v1088 = vsub.s32 %v1085, %v1087
        %v1089 = vrot.slane %v1081, %v1088
        %v1091 = vunpack.c.l.s4 1934713408
        %v1092 = vunpack.c.0.s8 %v1091
        %v1093 = vlaneseq
        %v1094 = vshrl.u32 %v1093, 7
        %v1095 = vsub.s32 %v1092, %v1094
        %v1096 = vrot.slane %v1082, %v1095
        %v1097 = vcombine.low %v1042, %v1057
        %v1098 = vcombine.high %v1042, %v1057
        %v1100 = vunpack.c.l.s4 1934713408
        %v1101 = vunpack.c.0.s8 %v1100
        %v1102 = vlaneseq
        %v1103 = vshrl.u32 %v1102, 7
        %v1104 = vsub.s32 %v1101, %v1103
        %v1105 = vrot.slane %v1097, %v1104
        %v1107 = vunpack.c.l.s4 1934713408
        %v1108 = vunpack.c.0.s8 %v1107
        %v1109 = vlaneseq
        %v1110 = vshrl.u32 %v1109, 7
        %v1111 = vsub.s32 %v1108, %v1110
        %v1112 = vrot.slane %v1098, %v1111
        %v1113 = vcombine.low %v1049, %v1064
        %v1114 = vcombine.high %v1049, %v1064
        %v1116 = vunpack.c.l.s4 1934713408
        %v1117 = vunpack.c.0.s8 %v1116
        %v1118 = vlaneseq
        %v1119 = vshrl.u32 %v1118, 7
        %v1120 = vsub.s32 %v1117, %v1119
        %v1121 = vrot.slane %v1113, %v1120
        %v1123 = vunpack.c.l.s4 1934713408
        %v1124 = vunpack.c.0.s8 %v1123
        %v1125 = vlaneseq
        %v1126 = vshrl.u32 %v1125, 7
        %v1127 = vsub.s32 %v1124, %v1126
        %v1128 = vrot.slane %v1114, %v1127
        %v1129 = vcombine.low %v1073, %v1105
        %v1130 = vcombine.high %v1073, %v1105
        %v1131 = vcombine.low %v1080, %v1112
        %v1132 = vcombine.high %v1080, %v1112
        %v1133 = vcombine.low %v1089, %v1121
        %v1134 = vcombine.high %v1089, %v1121
        %v1135 = vcombine.low %v1096, %v1128
        %v1136 = vcombine.high %v1096, %v1128
        %v1137 = vcombine.low %v1129, %v1131
        %v1138 = vcombine.high %v1129, %v1131
        %v1140 = vunpack.c.l.s4 1983009808
        %v1141 = vunpack.c.0.s8 %v1140
        %v1142 = vlaneseq
        %v1143 = vshrl.u32 %v1142, 7
        %v1144 = vsub.s32 %v1141, %v1143
        %v1145 = vrot.slane %v1137, %v1144
        %v1147 = vunpack.c.l.s4 1983009808
        %v1148 = vunpack.c.0.s8 %v1147
        %v1149 = vlaneseq
        %v1150 = vshrl.u32 %v1149, 7
        %v1151 = vsub.s32 %v1148, %v1150
        %v1152 = vrot.slane %v1138, %v1151
        %v1153 = vcombine.low %v1130, %v1132
        %v1154 = vcombine.high %v1130, %v1132
        %v1156 = vunpack.c.l.s4 1983009808
        %v1157 = vunpack.c.0.s8 %v1156
        %v1158 = vlaneseq
        %v1159 = vshrl.u32 %v1158, 7
        %v1160 = vsub.s32 %v1157, %v1159
        %v1161 = vrot.slane %v1153, %v1160
        %v1163 = vunpack.c.l.s4 1983009808
        %v1164 = vunpack.c.0.s8 %v1163
        %v1165 = vlaneseq
        %v1166 = vshrl.u32 %v1165, 7
        %v1167 = vsub.s32 %v1164, %v1166
        %v1168 = vrot.slane %v1154, %v1167
        %v1169 = vcombine.low %v1133, %v1135
        %v1170 = vcombine.high %v1133, %v1135
        %v1172 = vunpack.c.l.s4 1983009808
        %v1173 = vunpack.c.0.s8 %v1172
        %v1174 = vlaneseq
        %v1175 = vshrl.u32 %v1174, 7
        %v1176 = vsub.s32 %v1173, %v1175
        %v1177 = vrot.slane %v1169, %v1176
        %v1179 = vunpack.c.l.s4 1983009808
        %v1180 = vunpack.c.0.s8 %v1179
        %v1181 = vlaneseq
        %v1182 = vshrl.u32 %v1181, 7
        %v1183 = vsub.s32 %v1180, %v1182
        %v1184 = vrot.slane %v1170, %v1183
        %v1185 = vcombine.low %v1134, %v1136
        %v1186 = vcombine.high %v1134, %v1136
        %v1188 = vunpack.c.l.s4 1983009808
        %v1189 = vunpack.c.0.s8 %v1188
        %v1190 = vlaneseq
        %v1191 = vshrl.u32 %v1190, 7
        %v1192 = vsub.s32 %v1189, %v1191
        %v1193 = vrot.slane %v1185, %v1192
        %v1195 = vunpack.c.l.s4 1983009808
        %v1196 = vunpack.c.0.s8 %v1195
        %v1197 = vlaneseq
        %v1198 = vshrl.u32 %v1197, 7
        %v1199 = vsub.s32 %v1196, %v1198
        %v1200 = vrot.slane %v1186, %v1199
        %v1201 = vcombine.low %v1145, %v1161
        %v1202 = vcombine.high %v1145, %v1161
        %v1204 = vunpack.c.l.s4 1934713408
        %v1205 = vunpack.c.0.s8 %v1204
        %v1206 = vlaneseq
        %v1207 = vshrl.u32 %v1206, 7
        %v1208 = vsub.s32 %v1205, %v1207
        %v1209 = vrot.slane %v1201, %v1208
        %v1211 = vunpack.c.l.s4 1934713408
        %v1212 = vunpack.c.0.s8 %v1211
        %v1213 = vlaneseq
        %v1214 = vshrl.u32 %v1213, 7
        %v1215 = vsub.s32 %v1212, %v1214
        %v1216 = vrot.slane %v1202, %v1215
        %v1217 = vcombine.low %v1152, %v1168
        %v1219 = vunpack.c.l.s4 1934713408
        %v1220 = vunpack.c.0.s8 %v1219
        %v1221 = vlaneseq
        %v1222 = vshrl.u32 %v1221, 7
        %v1223 = vsub.s32 %v1220, %v1222
        %v1224 = vrot.slane %v1217, %v1223
        %v1225 = vcombine.low %v1177, %v1193
        %v1226 = vcombine.high %v1177, %v1193
        %v1228 = vunpack.c.l.s4 1934713408
        %v1229 = vunpack.c.0.s8 %v1228
        %v1230 = vlaneseq
        %v1231 = vshrl.u32 %v1230, 7
        %v1232 = vsub.s32 %v1229, %v1231
        %v1233 = vrot.slane %v1225, %v1232
        %v1235 = vunpack.c.l.s4 1934713408
        %v1236 = vunpack.c.0.s8 %v1235
        %v1237 = vlaneseq
        %v1238 = vshrl.u32 %v1237, 7
        %v1239 = vsub.s32 %v1236, %v1238
        %v1240 = vrot.slane %v1226, %v1239
        %v1241 = vcombine.low %v1184, %v1200
        %v1243 = vunpack.c.l.s4 1934713408
        %v1244 = vunpack.c.0.s8 %v1243
        %v1245 = vlaneseq
        %v1246 = vshrl.u32 %v1245, 7
        %v1247 = vsub.s32 %v1244, %v1246
        %v1248 = vrot.slane %v1241, %v1247
        %v1249 = vcombine.low %v1209, %v1233
        %v1250 = vcombine.high %v1209, %v1233
        %v1251 = vcombine.low %v1216, %v1240
        %v1252 = vcombine.high %v1216, %v1240
        %v1253 = vcombine.low %v1224, %v1248
        %v1254 = vcombine.high %v1224, %v1248
        %v1255 = vld [vmem:[%s832] sm:$0x1]
        %v1256 = vpack.c.bf16 %v1249, %v1249
        %v1257 = vpack.c.bf16 %v1250, %v1250
        %v1258 = vpack.c.bf16 %v1251, %v1251
        %v1259 = vpack.c.bf16 %v1252, %v1252
        %vm1260 = vcmask 130048
        %v1262 = vsel %vm1260, %v1256, 0
        %v1265 = vsel %vm1260, %v1258, 0
        %1267 = vmatprep.subr.bf16.mxu0 0
        %1268 = vmatpush1.bf16.xpose.msra.mxu0 0
        %1269 = vmatprep.subr.bf16.mxu0 0
        %1270 = vmatpush1.bf16.xpose.msra.mxu0 0
        %1271 = vmatprep.subr.bf16.mxu0 0
        %1272 = vmatpush1.bf16.xpose.msra.mxu0 0
        %1273 = vmatprep.subr.bf16.mxu0 0
        %1274 = vmatpush1.bf16.xpose.msra.mxu0 0
        %1275 = vmatprep.subr.bf16.mxu0 0
        %1276 = vmatpush1.bf16.xpose.msra.mxu0 0
        %1277 = vmatprep.subr.bf16.mxu0 0
        %1278 = vmatpush1.bf16.xpose.msra.mxu0 0
        %1279 = vmatprep.subr.bf16.mxu0 0
        %1280 = vmatpush1.bf16.xpose.msra.mxu0 0
        %1281 = vmatprep.subr.bf16.mxu0 0
        %1282 = vmatpush1.bf16.xpose.msra.mxu0 %v1265
        %1283 = vmatprep.subr.bf16.mxu0 0
        %1284 = vmatpush2.bf16.xpose.msra.mxu0 0
        %1285 = vmatprep.subr.bf16.mxu0 0
        %1286 = vmatpush2.bf16.xpose.msra.mxu0 0
        %1287 = vmatprep.subr.bf16.mxu0 0
        %1288 = vmatpush2.bf16.xpose.msra.mxu0 0
        %1289 = vmatprep.subr.bf16.mxu0 0
        %1290 = vmatpush2.bf16.xpose.msra.mxu0 0
        %1291 = vmatprep.subr.bf16.mxu0 0
        %1292 = vmatpush2.bf16.xpose.msra.mxu0 0
        %1293 = vmatprep.subr.bf16.mxu0 0
        %1294 = vmatpush2.bf16.xpose.msra.mxu0 0
        %1295 = vmatprep.subr.bf16.mxu0 0
        %1296 = vmatpush2.bf16.xpose.msra.mxu0 0
        %1297 = vmatprep.subr.bf16.mxu0 0
        %1298 = vmatpush2.bf16.xpose.msra.mxu0 0
        %1299 = vmatprep.mubr.bf16.mxu0 0
        %1300 = vmatmul.mubr.bf16.gmra.mxu0 %v1262
        %v1301 = vpop.f32.mrf.mxu0
        %v1302 = vadd.f32 0.0, %v1301
        %v1303 = vpop.f32.mrf.mxu0
        %v1304 = vpop.f32.mrf.mxu0
        %v1305 = vpop.f32.mrf.mxu0
        %1306 = vdwg.mxu0
        %v1308 = vsel %vm1260, %v1257, 0
        %v1311 = vsel %vm1260, %v1259, 0
        %1313 = vmatprep.subr.bf16.mxu0 0
        %1314 = vmatpush1.bf16.xpose.msra.mxu0 0
        %1315 = vmatprep.subr.bf16.mxu0 0
        %1316 = vmatpush1.bf16.xpose.msra.mxu0 0
        %1317 = vmatprep.subr.bf16.mxu0 0
        %1318 = vmatpush1.bf16.xpose.msra.mxu0 0
        %1319 = vmatprep.subr.bf16.mxu0 0
        %1320 = vmatpush1.bf16.xpose.msra.mxu0 0
        %1321 = vmatprep.subr.bf16.mxu0 0
        %1322 = vmatpush1.bf16.xpose.msra.mxu0 0
        %1323 = vmatprep.subr.bf16.mxu0 0
        %1324 = vmatpush1.bf16.xpose.msra.mxu0 0
        %1325 = vmatprep.subr.bf16.mxu0 0
        %1326 = vmatpush1.bf16.xpose.msra.mxu0 0
        %1327 = vmatprep.subr.bf16.mxu0 0
        %1328 = vmatpush1.bf16.xpose.msra.mxu0 %v1311
        %1329 = vmatprep.subr.bf16.mxu0 0
        %1330 = vmatpush2.bf16.xpose.msra.mxu0 0
        %1331 = vmatprep.subr.bf16.mxu0 0
        %1332 = vmatpush2.bf16.xpose.msra.mxu0 0
        %1333 = vmatprep.subr.bf16.mxu0 0
        %1334 = vmatpush2.bf16.xpose.msra.mxu0 0
        %1335 = vmatprep.subr.bf16.mxu0 0
        %1336 = vmatpush2.bf16.xpose.msra.mxu0 0
        %1337 = vmatprep.subr.bf16.mxu0 0
        %1338 = vmatpush2.bf16.xpose.msra.mxu0 0
        %1339 = vmatprep.subr.bf16.mxu0 0
        %1340 = vmatpush2.bf16.xpose.msra.mxu0 0
        %1341 = vmatprep.subr.bf16.mxu0 0
        %1342 = vmatpush2.bf16.xpose.msra.mxu0 0
        %1343 = vmatprep.subr.bf16.mxu0 0
        %1344 = vmatpush2.bf16.xpose.msra.mxu0 0
        %1345 = vmatprep.mubr.bf16.mxu0 0
        %1346 = vmatmul.mubr.bf16.gmra.mxu0 %v1308
        %v1347 = vpop.f32.mrf.mxu0
        %v1348 = vadd.f32 0.0, %v1347
        %v1349 = vpop.f32.mrf.mxu0
        %v1350 = vpop.f32.mrf.mxu0
        %v1351 = vpop.f32.mrf.mxu0
        %1352 = vdwg.mxu0
        %v1353 = vmul.f32 %v1302, 0.25
        %v1354 = vmul.f32 %v1348, 0.25
        %v1356 = vlaneseq
        %v1357 = vshrl.u32 %v1356, 7
        %v1358 = vsub.s32 0, %v1357
        %v1359 = vrot.slane %v1255, %v1358
        %v1361 = vadd.f32 %v1353, %v1359
        %v1362 = vadd.f32 %v1354, %v1359
        %vm1363 = vcmask 64512
        %v1364 = vsel %vm1363, %v1361, -inf
        %1365 = vmax.xlane.f32.xlu0 %v1364
        %v1366 = vpop.xlane.xlu0 %1365
        %v1367 = vsel %vm1363, %v1362, -inf
        %1368 = vmax.xlane.f32.xlu0 %v1367
        %v1369 = vpop.xlane.xlu0 %1368
        %v1370 = vsub.f32 %v1361, %v1366
        %v1371 = vsub.f32 %v1362, %v1369
        %v1372 = vmul.f32 %v1370, 1.442695
        %v1373 = vpow.pop %v1372
        %v1374 = vmul.f32 %v1371, 1.442695
        %v1375 = vpow.pop %v1374
        %v1376 = vsel %vm1363, %v1373, 0.0
        %1377 = vadd.xlane.f32.xlu0 %v1376
        %v1378 = vpop.xlane.xlu0 %1377
        %v1379 = vsel %vm1363, %v1375, 0.0
        %1380 = vadd.xlane.f32.xlu0 %v1379
        %v1381 = vpop.xlane.xlu0 %1380
        %v1382 = vrcp.pop %v1378
        %v1383 = vrcp.pop %v1381
        %v1384 = vmul.f32 %v1373, %v1382
        %v1385 = vmul.f32 %v1375, %v1383
        %v1386 = vpack.c.bf16 %v1384, %v1384
        %v1387 = vpack.c.bf16 %v1385, %v1385
        %v1388 = vpack.c.bf16 %v1253, %v1253
        %v1389 = vpack.c.bf16 %v1254, %v1254
        %v1391 = vsel %vm1363, %v1386, 0
        %vm1393 = vcmask 1043456
        %v1395 = vsel %vm1393, %v1388, 0
        %1397 = vmatprep.subr.bf16.mxu0 0
        %1398 = vmatpush1.bf16.msra.mxu0 0
        %1399 = vmatprep.subr.bf16.mxu0 0
        %1400 = vmatpush1.bf16.msra.mxu0 0
        %1401 = vmatprep.subr.bf16.mxu0 0
        %1402 = vmatpush1.bf16.msra.mxu0 0
        %1403 = vmatprep.subr.bf16.mxu0 0
        %1404 = vmatpush1.bf16.msra.mxu0 0
        %1405 = vmatprep.subr.bf16.mxu0 0
        %1406 = vmatpush1.bf16.msra.mxu0 0
        %1407 = vmatprep.subr.bf16.mxu0 0
        %1408 = vmatpush1.bf16.msra.mxu0 0
        %1409 = vmatprep.subr.bf16.mxu0 0
        %1410 = vmatpush1.bf16.msra.mxu0 0
        %1411 = vmatprep.subr.bf16.mxu0 0
        %1412 = vmatpush1.bf16.msra.mxu0 %v1395
        %1413 = vmatprep.subr.bf16.mxu0 0
        %1414 = vmatpush2.bf16.msra.mxu0 0
        %1415 = vmatprep.subr.bf16.mxu0 0
        %1416 = vmatpush2.bf16.msra.mxu0 0
        %1417 = vmatprep.subr.bf16.mxu0 0
        %1418 = vmatpush2.bf16.msra.mxu0 0
        %1419 = vmatprep.subr.bf16.mxu0 0
        %1420 = vmatpush2.bf16.msra.mxu0 0
        %1421 = vmatprep.subr.bf16.mxu0 0
        %1422 = vmatpush2.bf16.msra.mxu0 0
        %1423 = vmatprep.subr.bf16.mxu0 0
        %1424 = vmatpush2.bf16.msra.mxu0 0
        %1425 = vmatprep.subr.bf16.mxu0 0
        %1426 = vmatpush2.bf16.msra.mxu0 0
        %1427 = vmatprep.subr.bf16.mxu0 0
        %1428 = vmatpush2.bf16.msra.mxu0 0
        %1429 = vmatprep.mubr.bf16.mxu0 0
        %1430 = vmatmul.mubr.bf16.gmra.mxu0 %v1391
        %v1431 = vpop.f32.mrf.mxu0
        %v1432 = vadd.f32 0.0, %v1431
        %v1433 = vpop.f32.mrf.mxu0
        %v1434 = vpop.f32.mrf.mxu0
        %v1435 = vpop.f32.mrf.mxu0
        %1436 = vdwg.mxu0
        %v1438 = vsel %vm1363, %v1387, 0
        %v1441 = vsel %vm1393, %v1389, 0
        %1443 = vmatprep.subr.bf16.mxu0 0
        %1444 = vmatpush1.bf16.msra.mxu0 0
        %1445 = vmatprep.subr.bf16.mxu0 0
        %1446 = vmatpush1.bf16.msra.mxu0 0
        %1447 = vmatprep.subr.bf16.mxu0 0
        %1448 = vmatpush1.bf16.msra.mxu0 0
        %1449 = vmatprep.subr.bf16.mxu0 0
        %1450 = vmatpush1.bf16.msra.mxu0 0
        %1451 = vmatprep.subr.bf16.mxu0 0
        %1452 = vmatpush1.bf16.msra.mxu0 0
        %1453 = vmatprep.subr.bf16.mxu0 0
        %1454 = vmatpush1.bf16.msra.mxu0 0
        %1455 = vmatprep.subr.bf16.mxu0 0
        %1456 = vmatpush1.bf16.msra.mxu0 0
        %1457 = vmatprep.subr.bf16.mxu0 0
        %1458 = vmatpush1.bf16.msra.mxu0 %v1441
        %1459 = vmatprep.subr.bf16.mxu0 0
        %1460 = vmatpush2.bf16.msra.mxu0 0
        %1461 = vmatprep.subr.bf16.mxu0 0
        %1462 = vmatpush2.bf16.msra.mxu0 0
        %1463 = vmatprep.subr.bf16.mxu0 0
        %1464 = vmatpush2.bf16.msra.mxu0 0
        %1465 = vmatprep.subr.bf16.mxu0 0
        %1466 = vmatpush2.bf16.msra.mxu0 0
        %1467 = vmatprep.subr.bf16.mxu0 0
        %1468 = vmatpush2.bf16.msra.mxu0 0
        %1469 = vmatprep.subr.bf16.mxu0 0
        %1470 = vmatpush2.bf16.msra.mxu0 0
        %1471 = vmatprep.subr.bf16.mxu0 0
        %1472 = vmatpush2.bf16.msra.mxu0 0
        %1473 = vmatprep.subr.bf16.mxu0 0
        %1474 = vmatpush2.bf16.msra.mxu0 0
        %1475 = vmatprep.mubr.bf16.mxu0 0
        %1476 = vmatmul.mubr.bf16.gmra.mxu0 %v1438
        %v1477 = vpop.f32.mrf.mxu0
        %v1478 = vadd.f32 0.0, %v1477
        %v1479 = vpop.f32.mrf.mxu0
        %v1480 = vpop.f32.mrf.mxu0
        %v1481 = vpop.f32.mrf.mxu0
        %1482 = vdwg.mxu0
        %v1483 = vcombine.high %v1432, 0.0
        %v1485 = vunpack.c.l.s4 1983009808
        %v1486 = vunpack.c.0.s8 %v1485
        %v1487 = vlaneseq
        %v1488 = vshrl.u32 %v1487, 7
        %v1489 = vsub.s32 %v1486, %v1488
        %v1490 = vrot.slane %v1432, %v1489
        %v1492 = vunpack.c.l.s4 1983009808
        %v1493 = vunpack.c.0.s8 %v1492
        %v1494 = vlaneseq
        %v1495 = vshrl.u32 %v1494, 7
        %v1496 = vsub.s32 %v1493, %v1495
        %v1497 = vrot.slane %v1483, %v1496
        %v1498 = vcombine.high %v1478, 0.0
        %v1500 = vunpack.c.l.s4 1983009808
        %v1501 = vunpack.c.0.s8 %v1500
        %v1502 = vlaneseq
        %v1503 = vshrl.u32 %v1502, 7
        %v1504 = vsub.s32 %v1501, %v1503
        %v1505 = vrot.slane %v1478, %v1504
        %v1507 = vunpack.c.l.s4 1983009808
        %v1508 = vunpack.c.0.s8 %v1507
        %v1509 = vlaneseq
        %v1510 = vshrl.u32 %v1509, 7
        %v1511 = vsub.s32 %v1508, %v1510
        %v1512 = vrot.slane %v1498, %v1511
        %v1513 = vcombine.low %v1490, %v1505
        %v1514 = vcombine.high %v1490, %v1505
        %v1516 = vunpack.c.l.s4 1934713408
        %v1517 = vunpack.c.0.s8 %v1516
        %v1518 = vlaneseq
        %v1519 = vshrl.u32 %v1518, 7
        %v1520 = vsub.s32 %v1517, %v1519
        %v1521 = vrot.slane %v1513, %v1520
        %v1523 = vunpack.c.l.s4 1934713408
        %v1524 = vunpack.c.0.s8 %v1523
        %v1525 = vlaneseq
        %v1526 = vshrl.u32 %v1525, 7
        %v1527 = vsub.s32 %v1524, %v1526
        %v1528 = vrot.slane %v1514, %v1527
        %v1529 = vcombine.low %v1497, %v1512
        %v1530 = vcombine.high %v1497, %v1512
        %v1532 = vunpack.c.l.s4 1934713408
        %v1533 = vunpack.c.0.s8 %v1532
        %v1534 = vlaneseq
        %v1535 = vshrl.u32 %v1534, 7
        %v1536 = vsub.s32 %v1533, %v1535
        %v1537 = vrot.slane %v1529, %v1536
        %v1539 = vunpack.c.l.s4 1934713408
        %v1540 = vunpack.c.0.s8 %v1539
        %v1541 = vlaneseq
        %v1542 = vshrl.u32 %v1541, 7
        %v1543 = vsub.s32 %v1540, %v1542
        %v1544 = vrot.slane %v1530, %v1543
        %v1545 = vcombine.high %v1521, 0.0
        %v1546 = vcombine.high %v1528, 0.0
        %v1547 = vcombine.high %v1537, 0.0
        %v1548 = vcombine.high %v1544, 0.0
        %v1549 = vcombine.low %v1521, %v1528
        %v1551 = vunpack.c.l.s4 1983009808
        %v1552 = vunpack.c.0.s8 %v1551
        %v1553 = vlaneseq
        %v1554 = vshrl.u32 %v1553, 7
        %v1555 = vsub.s32 %v1552, %v1554
        %v1556 = vrot.slane %v1549, %v1555
        %v1557 = vcombine.low %v1545, %v1546
        %v1559 = vunpack.c.l.s4 1983009808
        %v1560 = vunpack.c.0.s8 %v1559
        %v1561 = vlaneseq
        %v1562 = vshrl.u32 %v1561, 7
        %v1563 = vsub.s32 %v1560, %v1562
        %v1564 = vrot.slane %v1557, %v1563
        %v1565 = vcombine.low %v1537, %v1544
        %v1567 = vunpack.c.l.s4 1983009808
        %v1568 = vunpack.c.0.s8 %v1567
        %v1569 = vlaneseq
        %v1570 = vshrl.u32 %v1569, 7
        %v1571 = vsub.s32 %v1568, %v1570
        %v1572 = vrot.slane %v1565, %v1571
        %v1573 = vcombine.low %v1547, %v1548
        %v1575 = vunpack.c.l.s4 1983009808
        %v1576 = vunpack.c.0.s8 %v1575
        %v1577 = vlaneseq
        %v1578 = vshrl.u32 %v1577, 7
        %v1579 = vsub.s32 %v1576, %v1578
        %v1580 = vrot.slane %v1573, %v1579
        %v1581 = vcombine.low %v1556, %v1564
        %v1583 = vunpack.c.l.s4 1934713408
        %v1584 = vunpack.c.0.s8 %v1583
        %v1585 = vlaneseq
        %v1586 = vshrl.u32 %v1585, 7
        %v1587 = vsub.s32 %v1584, %v1586
        %v1588 = vrot.slane %v1581, %v1587
        %v1589 = vcombine.low %v1572, %v1580
        %v1591 = vunpack.c.l.s4 1934713408
        %v1592 = vunpack.c.0.s8 %v1591
        %v1593 = vlaneseq
        %v1594 = vshrl.u32 %v1593, 7
        %v1595 = vsub.s32 %v1592, %v1594
        %v1596 = vrot.slane %v1589, %v1595
        %v1597 = vcombine.low %v1588, %v1596
        %v1598 = vcombine.high %v1588, %v1596
        %1600 = vrot.lane.b32.xlu0 %v1598, 16
        %v1601 = vpop.permute.xlu0 %1600
        %v1603 = vsel %vm1260, %v1597, %v1601
        %v1604 = vpack.c.bf16 %v1603, %v1603
        %v1605 = vld [vmem:[%s845] sm:$0xf]
        %v1606 = vld [vmem:[%s845 + $0x4] sm:$0xf]
        %v1607 = vld [vmem:[%s845 + $0x8] sm:$0xf]
        %v1608 = vld [vmem:[%s845 + $0xc] sm:$0xf]
        %v1609 = vld [vmem:[%s848] sm:$0x1]
        %v1611 = vlaneseq
        %v1612 = vshrl.u32 %v1611, 7
        %v1613 = vsub.s32 0, %v1612
        %v1614 = vrot.slane %v1609, %v1613
        %v1620 = vunpack.c.l.b16 %v1605
        %v1621 = vunpack.c.l.b16 %v1606
        %v1622 = vunpack.c.l.b16 %v1607
        %v1623 = vunpack.c.l.b16 %v1608
        %v1624 = vpack.c.b16 %v1621, %v1620
        %v1625 = vpack.c.b16 %v1623, %v1622
        %v1629 = vsel %vm943, %v1604, 0
        %1631 = vmatprep.subr.bf16.mxu0 0
        %1632 = vmatpush1.bf16.msra.mxu0 0
        %1633 = vmatprep.subr.bf16.mxu0 0
        %1634 = vmatpush1.bf16.msra.mxu0 0
        %1635 = vmatprep.subr.bf16.mxu0 0
        %1636 = vmatpush1.bf16.msra.mxu0 0
        %1637 = vmatprep.subr.bf16.mxu0 0
        %1638 = vmatpush1.bf16.msra.mxu0 0
        %1639 = vmatprep.subr.bf16.mxu0 0
        %1640 = vmatpush1.bf16.msra.mxu0 0
        %1641 = vmatprep.subr.bf16.mxu0 0
        %1642 = vmatpush1.bf16.msra.mxu0 0
        %1643 = vmatprep.subr.bf16.mxu0 0
        %1644 = vmatpush1.bf16.msra.mxu0 %v1625
        %1645 = vmatprep.subr.bf16.mxu0 0
        %1646 = vmatpush1.bf16.msra.mxu0 %v1624
        %1647 = vmatprep.subr.bf16.mxu0 0
        %1648 = vmatpush2.bf16.msra.mxu0 0
        %1649 = vmatprep.subr.bf16.mxu0 0
        %1650 = vmatpush2.bf16.msra.mxu0 0
        %1651 = vmatprep.subr.bf16.mxu0 0
        %1652 = vmatpush2.bf16.msra.mxu0 0
        %1653 = vmatprep.subr.bf16.mxu0 0
        %1654 = vmatpush2.bf16.msra.mxu0 0
        %1655 = vmatprep.subr.bf16.mxu0 0
        %1656 = vmatpush2.bf16.msra.mxu0 0
        %1657 = vmatprep.subr.bf16.mxu0 0
        %1658 = vmatpush2.bf16.msra.mxu0 0
        %1659 = vmatprep.subr.bf16.mxu0 0
        %1660 = vmatpush2.bf16.msra.mxu0 0
        %1661 = vmatprep.subr.bf16.mxu0 0
        %1662 = vmatpush2.bf16.msra.mxu0 0
        %1663 = vmatprep.mubr.bf16.mxu0 0
        %1664 = vmatmul.mubr.bf16.gmra.mxu0 %v1629
        %v1665 = vpop.f32.mrf.mxu0
        %v1666 = vadd.f32 %v1614, %v1665
        %v1667 = vpop.f32.mrf.mxu0
        %v1668 = vpop.f32.mrf.mxu0
        %v1669 = vpop.f32.mrf.mxu0
        %1670 = vdwg.mxu0
        %v1671 = vadd.f32 %v918, %v1666
        %v1672 = vld [vmem:[%s851] sm:$0x1]
        %v1673 = vld [vmem:[%s854] sm:$0x1]
        %v1674 = vsel %vm943, %v1671, 0.0
        %1675 = vadd.xlane.f32.xlu0 %v1674
        %v1676 = vpop.xlane.xlu0 %1675
        %v1677 = vrcp.pop 32.0
        %v1678 = vmul.f32 %v1676, %v1677
        %v1679 = vsub.f32 %v1671, %v1678
        %v1680 = vmul.f32 %v1679, %v1679
        %v1681 = vsel %vm943, %v1680, 0.0
        %1682 = vadd.xlane.f32.xlu0 %v1681
        %v1683 = vpop.xlane.xlu0 %1682
        %v1684 = vmul.f32 %v1683, %v1677
        %v1685 = vadd.f32 %v1684, 1e-05
        %v1686 = vrsqrt.pop %v1685
        %v1687 = vmul.f32 %v1679, %v1686
        %v1689 = vlaneseq
        %v1690 = vshrl.u32 %v1689, 7
        %v1691 = vsub.s32 0, %v1690
        %v1692 = vrot.slane %v1672, %v1691
        %v1694 = vmul.f32 %v1687, %v1692
        %v1696 = vlaneseq
        %v1697 = vshrl.u32 %v1696, 7
        %v1698 = vsub.s32 0, %v1697
        %v1699 = vrot.slane %v1673, %v1698
        %v1701 = vadd.f32 %v1694, %v1699
        %v1702 = vpack.c.bf16 %v1701, %v1701
        %v1703 = vld [vmem:[%s859] sm:$0xf]
        %v1704 = vld [vmem:[%s859 + $0x4] sm:$0xf]
        %v1705 = vld [vmem:[%s859 + $0x8] sm:$0xf]
        %v1706 = vld [vmem:[%s859 + $0xc] sm:$0xf]
        %v1707 = vld [vmem:[%s862] sm:$0x1]
        %v1709 = vlaneseq
        %v1710 = vshrl.u32 %v1709, 7
        %v1711 = vsub.s32 0, %v1710
        %v1712 = vrot.slane %v1707, %v1711
        %v1718 = vunpack.c.l.b16 %v1703
        %v1719 = vunpack.c.l.b16 %v1704
        %v1720 = vunpack.c.l.b16 %v1705
        %v1721 = vunpack.c.l.b16 %v1706
        %v1722 = vpack.c.b16 %v1719, %v1718
        %v1723 = vpack.c.b16 %v1721, %v1720
        %v1727 = vsel %vm943, %v1702, 0
        %1729 = vmatprep.subr.bf16.mxu0 0
        %1730 = vmatpush1.bf16.msra.mxu0 0
        %1731 = vmatprep.subr.bf16.mxu0 0
        %1732 = vmatpush1.bf16.msra.mxu0 0
        %1733 = vmatprep.subr.bf16.mxu0 0
        %1734 = vmatpush1.bf16.msra.mxu0 0
        %1735 = vmatprep.subr.bf16.mxu0 0
        %1736 = vmatpush1.bf16.msra.mxu0 0
        %1737 = vmatprep.subr.bf16.mxu0 0
        %1738 = vmatpush1.bf16.msra.mxu0 0
        %1739 = vmatprep.subr.bf16.mxu0 0
        %1740 = vmatpush1.bf16.msra.mxu0 0
        %1741 = vmatprep.subr.bf16.mxu0 0
        %1742 = vmatpush1.bf16.msra.mxu0 %v1723
        %1743 = vmatprep.subr.bf16.mxu0 0
        %1744 = vmatpush1.bf16.msra.mxu0 %v1722
        %1745 = vmatprep.subr.bf16.mxu0 0
        %1746 = vmatpush2.bf16.msra.mxu0 0
        %1747 = vmatprep.subr.bf16.mxu0 0
        %1748 = vmatpush2.bf16.msra.mxu0 0
        %1749 = vmatprep.subr.bf16.mxu0 0
        %1750 = vmatpush2.bf16.msra.mxu0 0
        %1751 = vmatprep.subr.bf16.mxu0 0
        %1752 = vmatpush2.bf16.msra.mxu0 0
        %1753 = vmatprep.subr.bf16.mxu0 0
        %1754 = vmatpush2.bf16.msra.mxu0 0
        %1755 = vmatprep.subr.bf16.mxu0 0
        %1756 = vmatpush2.bf16.msra.mxu0 0
        %1757 = vmatprep.subr.bf16.mxu0 0
        %1758 = vmatpush2.bf16.msra.mxu0 0
        %1759 = vmatprep.subr.bf16.mxu0 0
        %1760 = vmatpush2.bf16.msra.mxu0 0
        %1761 = vmatprep.mubr.bf16.mxu0 0
        %1762 = vmatmul.mubr.bf16.gmra.mxu0 %v1727
        %v1763 = vpop.f32.mrf.mxu0
        %v1764 = vadd.f32 %v1712, %v1763
        %v1765 = vpop.f32.mrf.mxu0
        %v1766 = vpop.f32.mrf.mxu0
        %v1767 = vpop.f32.mrf.mxu0
        %1768 = vdwg.mxu0
        %v1769 = vmul.f32 %v1764, 0.5
        %v1770 = vmul.f32 %v1764, 0.70710677
        %v1771 = verf.f32.pop %v1770
        %v1772 = vadd.f32 %v1771, 1.0
        %v1773 = vmul.f32 %v1769, %v1772
        %v1774 = vpack.c.bf16 %v1773, %v1773
        %v1775 = vld [vmem:[%s867] sm:$0xf]
        %v1776 = vld [vmem:[%s867 + $0x4] sm:$0xf]
        %v1777 = vld [vmem:[%s867 + $0x8] sm:$0xf]
        %v1778 = vld [vmem:[%s867 + $0xc] sm:$0xf]
        %v1779 = vld [vmem:[%s867 + $0x10] sm:$0xf]
        %v1780 = vld [vmem:[%s867 + $0x14] sm:$0xf]
        %v1781 = vld [vmem:[%s867 + $0x18] sm:$0xf]
        %v1782 = vld [vmem:[%s867 + $0x1c] sm:$0xf]
        %v1783 = vld [vmem:[%s870] sm:$0x1]
        %v1785 = vlaneseq
        %v1786 = vshrl.u32 %v1785, 7
        %v1787 = vsub.s32 0, %v1786
        %v1788 = vrot.slane %v1783, %v1787
        %v1798 = vunpack.c.l.b16 %v1775
        %v1799 = vunpack.c.l.b16 %v1776
        %v1800 = vunpack.c.l.b16 %v1777
        %v1801 = vunpack.c.l.b16 %v1778
        %v1802 = vunpack.c.l.b16 %v1779
        %v1803 = vunpack.c.l.b16 %v1780
        %v1804 = vunpack.c.l.b16 %v1781
        %v1805 = vunpack.c.l.b16 %v1782
        %v1806 = vpack.c.b16 %v1799, %v1798
        %v1807 = vpack.c.b16 %v1801, %v1800
        %v1808 = vpack.c.b16 %v1803, %v1802
        %v1809 = vpack.c.b16 %v1805, %v1804
        %vm1814 = vcmask 523264
        %v1816 = vsel %vm1814, %v1774, 0
        %1818 = vmatprep.subr.bf16.mxu0 0
        %1819 = vmatpush1.bf16.msra.mxu0 0
        %1820 = vmatprep.subr.bf16.mxu0 0
        %1821 = vmatpush1.bf16.msra.mxu0 0
        %1822 = vmatprep.subr.bf16.mxu0 0
        %1823 = vmatpush1.bf16.msra.mxu0 0
        %1824 = vmatprep.subr.bf16.mxu0 0
        %1825 = vmatpush1.bf16.msra.mxu0 0
        %1826 = vmatprep.subr.bf16.mxu0 0
        %1827 = vmatpush1.bf16.msra.mxu0 %v1809
        %1828 = vmatprep.subr.bf16.mxu0 0
        %1829 = vmatpush1.bf16.msra.mxu0 %v1808
        %1830 = vmatprep.subr.bf16.mxu0 0
        %1831 = vmatpush1.bf16.msra.mxu0 %v1807
        %1832 = vmatprep.subr.bf16.mxu0 0
        %1833 = vmatpush1.bf16.msra.mxu0 %v1806
        %1834 = vmatprep.subr.bf16.mxu0 0
        %1835 = vmatpush2.bf16.msra.mxu0 0
        %1836 = vmatprep.subr.bf16.mxu0 0
        %1837 = vmatpush2.bf16.msra.mxu0 0
        %1838 = vmatprep.subr.bf16.mxu0 0
        %1839 = vmatpush2.bf16.msra.mxu0 0
        %1840 = vmatprep.subr.bf16.mxu0 0
        %1841 = vmatpush2.bf16.msra.mxu0 0
        %1842 = vmatprep.subr.bf16.mxu0 0
        %1843 = vmatpush2.bf16.msra.mxu0 0
        %1844 = vmatprep.subr.bf16.mxu0 0
        %1845 = vmatpush2.bf16.msra.mxu0 0
        %1846 = vmatprep.subr.bf16.mxu0 0
        %1847 = vmatpush2.bf16.msra.mxu0 0
        %1848 = vmatprep.subr.bf16.mxu0 0
        %1849 = vmatpush2.bf16.msra.mxu0 0
        %1850 = vmatprep.mubr.bf16.mxu0 0
        %1851 = vmatmul.mubr.bf16.gmra.mxu0 %v1816
        %v1852 = vpop.f32.mrf.mxu0
        %v1853 = vadd.f32 %v1788, %v1852
        %v1854 = vpop.f32.mrf.mxu0
        %v1855 = vpop.f32.mrf.mxu0
        %v1856 = vpop.f32.mrf.mxu0
        %1857 = vdwg.mxu0
        %v1858 = vadd.f32 %v1701, %v1853
        %v1859 = vld [vmem:[%s873] sm:$0x1]
        %v1860 = vld [vmem:[%s876] sm:$0x1]
        %v1861 = vsel %vm943, %v1858, 0.0
        %1862 = vadd.xlane.f32.xlu0 %v1861
        %v1863 = vpop.xlane.xlu0 %1862
        %v1864 = vmul.f32 %v1863, %v1677
        %v1865 = vsub.f32 %v1858, %v1864
        %v1866 = vmul.f32 %v1865, %v1865
        %v1867 = vsel %vm943, %v1866, 0.0
        %1868 = vadd.xlane.f32.xlu0 %v1867
        %v1869 = vpop.xlane.xlu0 %1868
        %v1870 = vmul.f32 %v1869, %v1677
        %v1871 = vadd.f32 %v1870, 1e-05
        %v1872 = vrsqrt.pop %v1871
        %v1873 = vmul.f32 %v1865, %v1872
        %v1875 = vlaneseq
        %v1876 = vshrl.u32 %v1875, 7
        %v1877 = vsub.s32 0, %v1876
        %v1878 = vrot.slane %v1859, %v1877
        %v1880 = vmul.f32 %v1873, %v1878
        %v1882 = vlaneseq
        %v1883 = vshrl.u32 %v1882, 7
        %v1884 = vsub.s32 0, %v1883
        %v1885 = vrot.slane %v1860, %v1884
        %v1887 = vadd.f32 %v1880, %v1885
        %1888 = vst.msk [vmem:[#allocation2] sm:$0xff] %vm943, %v1887
        %p1889 = scmp.eq.s32.totalorder %s43, 1
        // Predicated region
        $region105: #{roberta_pooled_output.1} parent=99 // pred_check
          %p1890 = pneg %p1889
        $region106: #{roberta_pooled_output.1} parent=99 // pred_check_branch
          %1892 = sbr.rel (%p1890) target = $region108
        $region107: #{roberta_pooled_output.1} parent=99 // pred_region
          %v1893 = vpack.c.bf16 %v1887, %v1887
          %v1894 = vld [vmem:[%s16] sm:$0xf]
          %v1895 = vld [vmem:[%s16 + $0x4] sm:$0xf]
          %v1896 = vld [vmem:[%s16 + $0x8] sm:$0xf]
          %v1897 = vld [vmem:[%s16 + $0xc] sm:$0xf]
          %v1898 = vld [vmem:[%s17] sm:$0x1]
          %v1903 = vunpack.c.l.b16 %v1894
          %v1904 = vunpack.c.l.b16 %v1895
          %v1905 = vunpack.c.l.b16 %v1896
          %v1906 = vunpack.c.l.b16 %v1897
          %v1907 = vpack.c.b16 %v1904, %v1903
          %v1908 = vpack.c.b16 %v1906, %v1905
          %v1912 = vsel %vm943, %v1893, 0
          %1914 = vmatprep.subr.bf16.mxu0 0
          %1915 = vmatpush1.bf16.msra.mxu0 0
          %1916 = vmatprep.subr.bf16.mxu0 0
          %1917 = vmatpush1.bf16.msra.mxu0 0
          %1918 = vmatprep.subr.bf16.mxu0 0
          %1919 = vmatpush1.bf16.msra.mxu0 0
          %1920 = vmatprep.subr.bf16.mxu0 0
          %1921 = vmatpush1.bf16.msra.mxu0 0
          %1922 = vmatprep.subr.bf16.mxu0 0
          %1923 = vmatpush1.bf16.msra.mxu0 0
          %1924 = vmatprep.subr.bf16.mxu0 0
          %1925 = vmatpush1.bf16.msra.mxu0 0
          %1926 = vmatprep.subr.bf16.mxu0 0
          %1927 = vmatpush1.bf16.msra.mxu0 %v1908
          %1928 = vmatprep.subr.bf16.mxu0 0
          %1929 = vmatpush1.bf16.msra.mxu0 %v1907
          %1930 = vmatprep.subr.bf16.mxu0 0
          %1931 = vmatpush2.bf16.msra.mxu0 0
          %1932 = vmatprep.subr.bf16.mxu0 0
          %1933 = vmatpush2.bf16.msra.mxu0 0
          %1934 = vmatprep.subr.bf16.mxu0 0
          %1935 = vmatpush2.bf16.msra.mxu0 0
          %1936 = vmatprep.subr.bf16.mxu0 0
          %1937 = vmatpush2.bf16.msra.mxu0 0
          %1938 = vmatprep.subr.bf16.mxu0 0
          %1939 = vmatpush2.bf16.msra.mxu0 0
          %1940 = vmatprep.subr.bf16.mxu0 0
          %1941 = vmatpush2.bf16.msra.mxu0 0
          %1942 = vmatprep.subr.bf16.mxu0 0
          %1943 = vmatpush2.bf16.msra.mxu0 0
          %1944 = vmatprep.subr.bf16.mxu0 0
          %1945 = vmatpush2.bf16.msra.mxu0 0
          %1946 = vmatprep.mubr.bf16.mxu0 0
          %1947 = vmatmul.mubr.bf16.gmra.mxu0 %v1912
          %v1948 = vpop.f32.mrf.mxu0
          %v1949 = vadd.f32 %v1898, %v1948
          %v1950 = vpop.f32.mrf.mxu0
          %v1951 = vpop.f32.mrf.mxu0
          %v1952 = vpop.f32.mrf.mxu0
          %1953 = vdwg.mxu0
          %v1954 = vtanh.pop %v1949
          %v1955 = vld [vmem:[%s18] sm:$0x1]
          %v1956 = vmul.f32 %v1954, %v1955
          %vm1957 = vcmask 253952
          %v1958 = vsel %vm1957, %v1956, 0.0
          %1959 = vadd.xlane.f32.xlu0 %v1958
          %v1960 = vpop.xlane.xlu0 %1959
          %v1961 = vld [vmem:[#allocation3] sm:$0x1]
          %v1962 = vadd.f32 %v1960, %v1961
          %1963 = vst.msk [vmem:[%s820] sm:$0x1] %vm1957, %v1954
          %vm1964 = vcmask 0
          %1965 = vst.msk [vmem:[%s879] sm:$0x1] %vm1964, %v1962
        $region108: #{roberta_pooled_output.1} parent=99 // pred_fallthru
          _
        %s1966 = sand.u32 %s548, 1
        %s1967 = scalar_lea.sflag [#allocation5], %s1966
        %s1968 = sand.u32 %s548, 1
        %s1969 = scalar_lea.vmem [#allocation4], %s1968
        %p1970 = scmp.lt.s32.totalorder %s42, 1
        %s1971 = scalar_select %p1970, %s42, 1
        %s1972 = scalar_lea.vmem %s21, %s1971
        // Predicated region
        $region109: #{roberta_pooled_output.1} parent=99 // pred_check
          %p1973 = pneg %p558
        $region110: #{roberta_pooled_output.1} parent=99 // pred_check_branch
          %1975 = sbr.rel (%p1973) target = $region112
        $region111: #{roberta_pooled_output.1} parent=99 // pred_region
          %s1977 = ssub.s32 16, 16
          %1978 = vsyncadd %s1967, %s1977
          %s1979 = smul.addr %s42, 16
          %s1980 = scalar_lea.hbm %s20, %s1979
          %s1982 = sshll.u32 %s1969, 4
          %s1983 = int_to_ptr.vmem [resolvable:$true] %s1982
          %1985 = dma.vmem_to_hbm [thread:$0]  %s1983, 16, %s1980, %s1967
        $region112: #{roberta_pooled_output.1} parent=99 // pred_fallthru
          _
        // Predicated region
        $region113: #{roberta_pooled_output.1} parent=99 // pred_check
          %p1986 = pneg %p584
        $region114: #{roberta_pooled_output.1} parent=99 // pred_check_branch
          %1988 = sbr.rel (%p1986) target = $region116
        $region115: #{roberta_pooled_output.1} parent=99 // pred_region
          _
        $region116: #{roberta_pooled_output.1} parent=99 // pred_fallthru
          _
      $region100: #{roberta_pooled_output.1} parent=5 // pred_fallthru
        _
      %p1989 = scmp.le.s32.totalorder 2, %s33
      // Predicated region
      $region117: #{roberta_pooled_output.1} parent=5 // pred_check
        %p1990 = pneg %p1989
      $region118: #{roberta_pooled_output.1} parent=5 // pred_check_branch
        %1992 = sbr.rel (%p1990) target = $region120
      $region119: #{roberta_pooled_output.1} parent=5 // pred_region
        %s1993 = ssub.s32 %s33, 2
        // Predicated region
        $region121: #{roberta_pooled_output.1} parent=119 // pred_check
          %p1994 = pneg %p564
        $region122: #{roberta_pooled_output.1} parent=119 // pred_check_branch
          %1996 = sbr.rel (%p1994) target = $region124
        $region123: #{roberta_pooled_output.1} parent=119 // pred_region
          %s1997 = sand.u32 %s549, 1
          %s1998 = scalar_lea.sflag [#allocation5], %s1997
          %s1999 = sand.u32 %s549, 1
          %s2000 = scalar_lea.vmem [#allocation4], %s1999
          %2001 = dma.done %s1998, 16
        $region124: #{roberta_pooled_output.1} parent=119 // pred_fallthru
          _
        // Predicated region
        $region125: #{roberta_pooled_output.1} parent=119 // pred_check
          %p2002 = pneg %p590
        $region126: #{roberta_pooled_output.1} parent=119 // pred_check_branch
          %2004 = sbr.rel (%p2002) target = $region128
        $region127: #{roberta_pooled_output.1} parent=119 // pred_region
          %p2005 = scmp.lt.s32.totalorder %s44, 1
          %s2006 = scalar_select %p2005, %s44, 1
          %s2007 = scalar_lea.vmem %s21, %s2006
        $region128: #{roberta_pooled_output.1} parent=119 // pred_fallthru
          _
      $region120: #{roberta_pooled_output.1} parent=5 // pred_fallthru
        _
    $region6: #{roberta_pooled_output.1} parent=1 // loop_footer
      %s37 = sadd.s32 1, %s33
    $region7: #{roberta_pooled_output.1} parent=1 // loop_footer_branch
      %32 = sbr.rel target = $region3
    $region8: #{roberta_pooled_output.1} parent=1 // loop_exit
      _
    %2008 = vsyncpa [#allocation5], 1
    %s2009 = scalar_lea.sflag [#allocation5], 1
    %2010 = vsyncpa %s2009, 1

</llo_original>
